<compile_context>
chip_gen: v7x
topology: tpu7x:2x2x1
jax: 0.10.0
libtpu: 0.0.40
codegen_flags: <defaults>
</compile_context>

<pallas_src>
import jax
import jax.numpy as jnp
from jax.experimental import pallas as pl
from jax.experimental.pallas import tpu as pltpu

_OUT_LANES = 128  # lane-dense output slab width (unmasked vst)


def _round_up(x, m):
    return (x + m - 1) // m * m


# ----------------------------------------------------------------------------
# Kernel
# ----------------------------------------------------------------------------
def _regressor_kernel(img_ref, txt_ref, w1i_ref, w1t_ref, w2i_ref, w2t_ref,
                      vp_ref, sc_ref, out_ref):
    """One grid step: TILE_B rows of image and text features.

    img_ref/txt_ref : (TB, D)   per-modality CLIP embeddings
    w1i/w1t         : (D, H)    first Linear weights (in, out), per head
    w2i/w2t         : (H, H2)   second Linear weights, per head
    vp_ref          : (10, P)   rows 0-4 image head, 5-9 text head:
                                gamma, beta, b1, b2, w3_row (each lane-padded)
    sc_ref          : (3,) SMEM [b3_img, b3_txt, alpha=sigmoid(fusion_weight)]
    out_ref         : (TB, 128) fused prediction broadcast across lanes
    """
    d = img_ref.shape[-1]
    h = w1i_ref.shape[-1]
    h2 = w2i_ref.shape[-1]

    def head(x_ref, w1_ref, w2_ref, row0, b3):
        gamma = vp_ref[row0 + 0:row0 + 1, :d]
        beta = vp_ref[row0 + 1:row0 + 2, :d]
        b1 = vp_ref[row0 + 2:row0 + 3, :h]
        b2 = vp_ref[row0 + 3:row0 + 4, :h2]
        w3row = vp_ref[row0 + 4:row0 + 5, :h2]

        # ---- LayerNorm: two-pass, f32 stats (matches nn.LayerNorm) ----
        x = x_ref[...].astype(jnp.float32)              # (TB, D)
        mu = jnp.mean(x, axis=-1, keepdims=True)
        xc = x - mu
        var = jnp.mean(xc * xc, axis=-1, keepdims=True)
        xn = xc * jax.lax.rsqrt(var + 1e-5) * gamma + beta

        # ---- MLP: two per-head MXU matmuls, f32 accumulation ----
        cdt = w1_ref.dtype                               # f32 or bf16 operands
        h1 = jnp.dot(xn.astype(cdt), w1_ref[...],
                     preferred_element_type=jnp.float32) + b1
        h1 = jnp.maximum(h1, 0.0)                        # ReLU (+Dropout=identity)
        h2a = jnp.dot(h1.astype(cdt), w2_ref[...],
                      preferred_element_type=jnp.float32) + b2
        h2a = jnp.maximum(h2a, 0.0)                      # (TB, H2)

        # ---- final Linear(H2 -> 1): VPU multiply + lane reduce (no N=1 MXU) ----
        pred = jnp.sum(h2a * w3row, axis=-1, keepdims=True) + b3
        return jnp.maximum(pred, 0.0)                    # (TB, 1)

    img_pred = head(img_ref, w1i_ref, w2i_ref, 0, sc_ref[0])
    txt_pred = head(txt_ref, w1t_ref, w2t_ref, 5, sc_ref[1])

    # ---- learnable fusion: alpha precomputed on host (scalar from SMEM) ----
    alpha = sc_ref[2]
    fused = alpha * img_pred + (1.0 - alpha) * txt_pred  # (TB, 1)

    # Lane-dense store (unmasked vst); wrapper slices column 0.
    out_ref[...] = jnp.broadcast_to(fused.astype(out_ref.dtype), out_ref.shape)


# ----------------------------------------------------------------------------
# Wrapper
# ----------------------------------------------------------------------------
def clip_multimodal_regressor(img_feat, txt_feat, fused_params, *,
                              tile_b=256, out_dtype=jnp.float32):
    """Forward pass.  `fused_params` comes from `prepare_fused_params` (one-time)."""
    B, D = img_feat.shape

    w1i = fused_params["w1_img"]
    w1t = fused_params["w1_txt"]
    w2i = fused_params["w2_img"]
    w2t = fused_params["w2_txt"]
    vec = fused_params["vec"]
    sc = fused_params["scalars"]
    H = w1i.shape[1]
    H2 = w2i.shape[1]

    # Batch tile: sublane-aligned, capped at ceil(B/2) so the grid has >= 2
    # steps whenever possible (keeps v7x's second TensorCore busy), and at
    # tile_b (vreg-pressure / scoped-VMEM budget: 16 MiB v5e, 32 MiB v6e/v7x).
    tb = max(8, min(_round_up(tile_b, 8), _round_up((B + 1) // 2, 8)))
    b_pad = _round_up(B, tb)
    pad = b_pad - B
    if pad:
        # Padded rows are all-zero -> finite predictions, sliced away below.
        img_feat = jnp.pad(img_feat, ((0, pad), (0, 0)))
        txt_feat = jnp.pad(txt_feat, ((0, pad), (0, 0)))

    # Explicit scoped-VMEM budget: 2x estimate + slack, clamped to [16, 64] MiB.
    in_b = jnp.dtype(img_feat.dtype).itemsize
    w_b = jnp.dtype(w1i.dtype).itemsize
    o_b = jnp.dtype(out_dtype).itemsize
    est = (2 * 2 * tb * D * in_b                                   # 2 feats, dbl-buf
           + (w1i.size + w1t.size + w2i.size + w2t.size) * w_b     # weights (resident)
           + vec.size * 4
           + 2 * tb * _OUT_LANES * o_b)                            # output, dbl-buf
    vmem_limit = int(min(max(2 * est + (4 << 20), 16 << 20), 64 << 20))

    def resident_spec(shape, single_buffer):
        # Weights never change across the grid; single-buffer them to halve
        # their VMEM footprint.
        if single_buffer:
            return pl.BlockSpec(shape, lambda i: (0, 0),
                                pipeline_mode=pl.Buffered(1))
        return pl.BlockSpec(shape, lambda i: (0, 0))

    def run(single_buffer):
        in_specs = [
            pl.BlockSpec((tb, D), lambda i: (i, 0)),               # img feats
            pl.BlockSpec((tb, D), lambda i: (i, 0)),               # txt feats
            resident_spec(w1i.shape, single_buffer),
            resident_spec(w1t.shape, single_buffer),
            resident_spec(w2i.shape, single_buffer),
            resident_spec(w2t.shape, single_buffer),
            resident_spec(vec.shape, single_buffer),               # packed small vecs
            pl.BlockSpec(memory_space=pltpu.MemorySpace.SMEM),     # 3 scalars
        ]
        return pl.pallas_call(
            _regressor_kernel,
            out_shape=jax.ShapeDtypeStruct((b_pad, _OUT_LANES), out_dtype),
            grid=(b_pad // tb,),
            in_specs=in_specs,
            out_specs=pl.BlockSpec((tb, _OUT_LANES), lambda i: (i, 0)),
            compiler_params=pltpu.CompilerParams(
                dimension_semantics=("parallel",),                 # megacore / 2-TC
                vmem_limit_bytes=vmem_limit),
        )(img_feat, txt_feat, w1i, w1t, w2i, w2t, vec, sc)

    try:
        out = run(single_buffer=True)
    except Exception:
        # Fallback for jax versions without BlockSpec.pipeline_mode support:
        # identical kernel, default double-buffered resident blocks.
        out = run(single_buffer=False)

    return out[:B, 0:1].astype(jnp.float32)


# ----------------------------------------------------------------------------
# Parameter handling (PyTorch-layout params -> kernel buffers)
# ----------------------------------------------------------------------------
def prepare_fused_params(params, *, compute_dtype=jnp.float32):
    """One-time prep: transpose Linear weights to (in, out), pack small vectors
    and scalars.  `compute_dtype` is the MXU operand dtype (bf16 on v6e/v7x for
    full-rate MXU + halved weight VMEM; accumulation stays f32)."""
    img, txt = params["img"], params["txt"]

    # PyTorch nn.Linear weights are (out, in); the MXU wants (in, out).
    w1_img = img["w1"].T.astype(compute_dtype)    # (D, H)
    w1_txt = txt["w1"].T.astype(compute_dtype)
    w2_img = img["w2"].T.astype(compute_dtype)    # (H, H2)
    w2_txt = txt["w2"].T.astype(compute_dtype)

    D = w1_img.shape[0]
    H = w1_img.shape[1]
    H2 = w2_img.shape[1]
    p_lanes = _round_up(max(D, H, H2), 128)

    def row(v):
        v = v.astype(jnp.float32)
        return jnp.pad(v, (0, p_lanes - v.shape[0]))[None, :]

    def head_rows(p):
        return [row(p["gamma"]), row(p["beta"]), row(p["b1"]),
                row(p["b2"]), row(p["w3"][0])]

    vec = jnp.concatenate(head_rows(img) + head_rows(txt), axis=0)  # (10, P), f32

    alpha = jax.nn.sigmoid(params["fusion_weight"].astype(jnp.float32))
    scalars = jnp.stack([img["b3"][0].astype(jnp.float32),
                         txt["b3"][0].astype(jnp.float32),
                         alpha])                                    # (3,)

    return {"w1_img": w1_img, "w1_txt": w1_txt,
            "w2_img": w2_img, "w2_txt": w2_txt,
            "vec": vec, "scalars": scalars}


def init_params(key, embed_dim, hidden_dim):
    """Mirror the PyTorch module's _init_weights: kaiming_normal_(fan_out, relu),
    zero biases, LayerNorm gamma=1 / beta=0, fusion_weight=0.5.  PyTorch layout."""
    h2 = hidden_dim // 2

    def head(k):
        k1, k2, k3 = jax.random.split(k, 3)
        w1 = jax.random.normal(k1, (hidden_dim, embed_dim), jnp.float32) * jnp.sqrt(2.0 / hidden_dim)
        w2 = jax.random.normal(k2, (h2, hidden_dim), jnp.float32) * jnp.sqrt(2.0 / h2)
        w3 = jax.random.normal(k3, (1, h2), jnp.float32) * jnp.sqrt(2.0 / 1.0)
        return {
            "gamma": jnp.ones((embed_dim,), jnp.float32),
            "beta": jnp.zeros((embed_dim,), jnp.float32),
            "w1": w1, "b1": jnp.zeros((hidden_dim,), jnp.float32),
            "w2": w2, "b2": jnp.zeros((h2,), jnp.float32),
            "w3": w3, "b3": jnp.zeros((1,), jnp.float32),
        }

    k_img, k_txt = jax.random.split(key)
    return {"img": head(k_img), "txt": head(k_txt),
            "fusion_weight": jnp.asarray(0.5, jnp.float32)}


def _reference(img_feat, txt_feat, params):
    """Pure-JAX reference of the module's forward pass (eval mode)."""
    def head(x, p):
        mu = jnp.mean(x, -1, keepdims=True)
        var = jnp.mean((x - mu) ** 2, -1, keepdims=True)
        xn = (x - mu) / jnp.sqrt(var + 1e-5) * p["gamma"] + p["beta"]
        h1 = jax.nn.relu(xn @ p["w1"].T + p["b1"])
        h2 = jax.nn.relu(h1 @ p["w2"].T + p["b2"])
        return jax.nn.relu(h2 @ p["w3"].T + p["b3"])
    a = jax.nn.sigmoid(params["fusion_weight"])
    return a * head(img_feat, params["img"]) + (1 - a) * head(txt_feat, params["txt"])


if __name__ == "__main__":
    # Small shapes consistent with the module's forward:
    #   B = batch, D = CLIP embed dim, H = regression hidden dim.
    B, D, H = 8, 64, 32

    key = jax.random.PRNGKey(0)
    k_params, k_img, k_txt = jax.random.split(key, 3)

    params = init_params(k_params, embed_dim=D, hidden_dim=H)

    # Stand-ins for clip_model.encode_image / encode_text outputs.
    img_feat = jax.random.normal(k_img, (B, D), jnp.float32)
    txt_feat = jax.random.normal(k_txt, (B, D), jnp.float32)

    ref = _reference(img_feat, txt_feat, params)

    # f32 MXU operands (v5e-friendly path) — strict correctness check.
    fp32 = prepare_fused_params(params, compute_dtype=jnp.float32)
    out_f32 = jax.block_until_ready(clip_multimodal_regressor(img_feat, txt_feat, fp32))
    assert out_f32.shape == (B, 1)
    assert jnp.allclose(out_f32, ref, atol=1e-4, rtol=1e-4)

    # bf16 MXU operands + bf16 lane-dense output (v6e/v7x production path) —
    # loose sanity bound (bf16 rounding only; catches gross errors).
    fpbf = prepare_fused_params(params, compute_dtype=jnp.bfloat16)
    out_bf16 = jax.block_until_ready(
        clip_multimodal_regressor(img_feat, txt_feat, fpbf, out_dtype=jnp.bfloat16))
    assert out_bf16.shape == (B, 1)
    assert jnp.allclose(out_bf16, ref, atol=0.5, rtol=0.05)

    print("KERNEL_OK")
</pallas_src>

<mosaic_0001>
module attributes {stable_mosaic.version = 11 : i64} {
  func.func @_regressor_kernel(%arg0: i32, %arg1: memref<8x64xf32, #tpu.memory_space<vmem>>, %arg2: memref<8x64xf32, #tpu.memory_space<vmem>>, %arg3: memref<64x32xf32, #tpu.memory_space<vmem>>, %arg4: memref<64x32xf32, #tpu.memory_space<vmem>>, %arg5: memref<32x16xf32, #tpu.memory_space<vmem>>, %arg6: memref<32x16xf32, #tpu.memory_space<vmem>>, %arg7: memref<10x128xf32, #tpu.memory_space<vmem>>, %arg8: memref<3xf32, #tpu.memory_space<smem>>, %arg9: memref<8x128xf32, #tpu.memory_space<vmem>>) attributes {dimension_semantics = [#tpu.dimension_semantics<parallel>], iteration_bounds = array<i64: 1>, scalar_prefetch = 0 : i64, scratch_operands = 0 : i64, tpu.core_type = #tpu.core_type<tc>, window_params = [{transform_indices = @transform_0, window_bounds = array<i64: 8, 64>}, {transform_indices = @transform_1, window_bounds = array<i64: 8, 64>}, {pipeline_mode = #tpu.pipeline_mode<synchronous>, transform_indices = @transform_2, window_bounds = array<i64: 64, 32>}, {pipeline_mode = #tpu.pipeline_mode<synchronous>, transform_indices = @transform_3, window_bounds = array<i64: 64, 32>}, {pipeline_mode = #tpu.pipeline_mode<synchronous>, transform_indices = @transform_4, window_bounds = array<i64: 32, 16>}, {pipeline_mode = #tpu.pipeline_mode<synchronous>, transform_indices = @transform_5, window_bounds = array<i64: 32, 16>}, {pipeline_mode = #tpu.pipeline_mode<synchronous>, transform_indices = @transform_6, window_bounds = array<i64: 10, 128>}, {transform_indices = @transform_7, window_bounds = array<i64: 3>}, {transform_indices = @transform_8, window_bounds = array<i64: 8, 128>}]} {
    %c0 = arith.constant 0 : index
    %0 = memref.load %arg8[%c0] : memref<3xf32, #tpu.memory_space<smem>>
    %c0_0 = arith.constant 0 : index
    %c0_1 = arith.constant 0 : index
    %1 = vector.load %arg7[%c0_0, %c0_1] : memref<10x128xf32, #tpu.memory_space<vmem>>, vector<1x64xf32>
    %c1 = arith.constant 1 : index
    %c0_2 = arith.constant 0 : index
    %2 = vector.load %arg7[%c1, %c0_2] : memref<10x128xf32, #tpu.memory_space<vmem>>, vector<1x64xf32>
    %c2 = arith.constant 2 : index
    %c0_3 = arith.constant 0 : index
    %3 = vector.load %arg7[%c2, %c0_3] : memref<10x128xf32, #tpu.memory_space<vmem>>, vector<1x32xf32>
    %c3 = arith.constant 3 : index
    %c0_4 = arith.constant 0 : index
    %4 = vector.load %arg7[%c3, %c0_4] : memref<10x128xf32, #tpu.memory_space<vmem>>, vector<1x16xf32>
    %c4 = arith.constant 4 : index
    %c0_5 = arith.constant 0 : index
    %5 = vector.load %arg7[%c4, %c0_5] : memref<10x128xf32, #tpu.memory_space<vmem>>, vector<1x16xf32>
    %c0_6 = arith.constant 0 : index
    %c0_7 = arith.constant 0 : index
    %6 = vector.load %arg1[%c0_6, %c0_7] : memref<8x64xf32, #tpu.memory_space<vmem>>, vector<8x64xf32>
    %cst = arith.constant dense<0.000000e+00> : vector<8xf32>
    %7 = vector.multi_reduction <add>, %6, %cst [1] : vector<8x64xf32> to vector<8xf32>
    %8 = vector.shape_cast %7 : vector<8xf32> to vector<8x1xf32>
    %cst_8 = arith.constant 6.400000e+01 : f32
    %9 = vector.broadcast %cst_8 : f32 to vector<8x1xf32>
    %10 = arith.divf %8, %9 : vector<8x1xf32>
    %11 = vector.broadcast %10 : vector<8x1xf32> to vector<8x64xf32>
    %12 = arith.subf %6, %11 : vector<8x64xf32>
    %13 = arith.mulf %12, %12 : vector<8x64xf32>
    %cst_9 = arith.constant dense<0.000000e+00> : vector<8xf32>
    %14 = vector.multi_reduction <add>, %13, %cst_9 [1] : vector<8x64xf32> to vector<8xf32>
    %15 = vector.shape_cast %14 : vector<8xf32> to vector<8x1xf32>
    %cst_10 = arith.constant 6.400000e+01 : f32
    %16 = vector.broadcast %cst_10 : f32 to vector<8x1xf32>
    %17 = arith.divf %15, %16 : vector<8x1xf32>
    %cst_11 = arith.constant 9.99999974E-6 : f32
    %18 = vector.broadcast %cst_11 : f32 to vector<8x1xf32>
    %19 = arith.addf %17, %18 : vector<8x1xf32>
    %20 = math.rsqrt %19 : vector<8x1xf32>
    %21 = vector.broadcast %20 : vector<8x1xf32> to vector<8x64xf32>
    %22 = arith.mulf %12, %21 : vector<8x64xf32>
    %23 = vector.broadcast %1 : vector<1x64xf32> to vector<8x64xf32>
    %24 = arith.mulf %22, %23 : vector<8x64xf32>
    %25 = vector.broadcast %2 : vector<1x64xf32> to vector<8x64xf32>
    %26 = arith.addf %24, %25 : vector<8x64xf32>
    %c0_12 = arith.constant 0 : index
    %c0_13 = arith.constant 0 : index
    %27 = vector.load %arg3[%c0_12, %c0_13] : memref<64x32xf32, #tpu.memory_space<vmem>>, vector<64x32xf32>
    %cst_14 = arith.constant dense<0.000000e+00> : vector<8x32xf32>
    %28 = tpu.matmul %26, %27, %cst_14 {dimension_numbers = #tpu.dot_dimension_numbers<[1], [0], [0], [1], [0, 0, 1, 1], [], []>} : vector<8x64xf32>, vector<64x32xf32>, vector<8x32xf32> -> vector<8x32xf32>
    %29 = vector.broadcast %3 : vector<1x32xf32> to vector<8x32xf32>
    %30 = arith.addf %28, %29 : vector<8x32xf32>
    %cst_15 = arith.constant 0.000000e+00 : f32
    %31 = vector.broadcast %cst_15 : f32 to vector<8x32xf32>
    %32 = arith.maximumf %30, %31 : vector<8x32xf32>
    %c0_16 = arith.constant 0 : index
    %c0_17 = arith.constant 0 : index
    %33 = vector.load %arg5[%c0_16, %c0_17] : memref<32x16xf32, #tpu.memory_space<vmem>>, vector<32x16xf32>
    %cst_18 = arith.constant dense<0.000000e+00> : vector<8x16xf32>
    %34 = tpu.matmul %32, %33, %cst_18 {dimension_numbers = #tpu.dot_dimension_numbers<[1], [0], [0], [1], [0, 0, 1, 1], [], []>} : vector<8x32xf32>, vector<32x16xf32>, vector<8x16xf32> -> vector<8x16xf32>
    %35 = vector.broadcast %4 : vector<1x16xf32> to vector<8x16xf32>
    %36 = arith.addf %34, %35 : vector<8x16xf32>
    %cst_19 = arith.constant 0.000000e+00 : f32
    %37 = vector.broadcast %cst_19 : f32 to vector<8x16xf32>
    %38 = arith.maximumf %36, %37 : vector<8x16xf32>
    %39 = vector.broadcast %5 : vector<1x16xf32> to vector<8x16xf32>
    %40 = arith.mulf %38, %39 : vector<8x16xf32>
    %cst_20 = arith.constant dense<0.000000e+00> : vector<8xf32>
    %41 = vector.multi_reduction <add>, %40, %cst_20 [1] : vector<8x16xf32> to vector<8xf32>
    %42 = vector.shape_cast %41 : vector<8xf32> to vector<8x1xf32>
    %43 = vector.broadcast %0 : f32 to vector<8x1xf32>
    %44 = arith.addf %42, %43 : vector<8x1xf32>
    %cst_21 = arith.constant 0.000000e+00 : f32
    %45 = vector.broadcast %cst_21 : f32 to vector<8x1xf32>
    %46 = arith.maximumf %44, %45 : vector<8x1xf32>
    %c1_22 = arith.constant 1 : index
    %47 = memref.load %arg8[%c1_22] : memref<3xf32, #tpu.memory_space<smem>>
    %c5 = arith.constant 5 : index
    %c0_23 = arith.constant 0 : index
    %48 = vector.load %arg7[%c5, %c0_23] : memref<10x128xf32, #tpu.memory_space<vmem>>, vector<1x64xf32>
    %c6 = arith.constant 6 : index
    %c0_24 = arith.constant 0 : index
    %49 = vector.load %arg7[%c6, %c0_24] : memref<10x128xf32, #tpu.memory_space<vmem>>, vector<1x64xf32>
    %c7 = arith.constant 7 : index
    %c0_25 = arith.constant 0 : index
    %50 = vector.load %arg7[%c7, %c0_25] : memref<10x128xf32, #tpu.memory_space<vmem>>, vector<1x32xf32>
    %c8 = arith.constant 8 : index
    %c0_26 = arith.constant 0 : index
    %51 = vector.load %arg7[%c8, %c0_26] : memref<10x128xf32, #tpu.memory_space<vmem>>, vector<1x16xf32>
    %c9 = arith.constant 9 : index
    %c0_27 = arith.constant 0 : index
    %52 = vector.load %arg7[%c9, %c0_27] : memref<10x128xf32, #tpu.memory_space<vmem>>, vector<1x16xf32>
    %c0_28 = arith.constant 0 : index
    %c0_29 = arith.constant 0 : index
    %53 = vector.load %arg2[%c0_28, %c0_29] : memref<8x64xf32, #tpu.memory_space<vmem>>, vector<8x64xf32>
    %cst_30 = arith.constant dense<0.000000e+00> : vector<8xf32>
    %54 = vector.multi_reduction <add>, %53, %cst_30 [1] : vector<8x64xf32> to vector<8xf32>
    %55 = vector.shape_cast %54 : vector<8xf32> to vector<8x1xf32>
    %cst_31 = arith.constant 6.400000e+01 : f32
    %56 = vector.broadcast %cst_31 : f32 to vector<8x1xf32>
    %57 = arith.divf %55, %56 : vector<8x1xf32>
    %58 = vector.broadcast %57 : vector<8x1xf32> to vector<8x64xf32>
    %59 = arith.subf %53, %58 : vector<8x64xf32>
    %60 = arith.mulf %59, %59 : vector<8x64xf32>
    %cst_32 = arith.constant dense<0.000000e+00> : vector<8xf32>
    %61 = vector.multi_reduction <add>, %60, %cst_32 [1] : vector<8x64xf32> to vector<8xf32>
    %62 = vector.shape_cast %61 : vector<8xf32> to vector<8x1xf32>
    %cst_33 = arith.constant 6.400000e+01 : f32
    %63 = vector.broadcast %cst_33 : f32 to vector<8x1xf32>
    %64 = arith.divf %62, %63 : vector<8x1xf32>
    %cst_34 = arith.constant 9.99999974E-6 : f32
    %65 = vector.broadcast %cst_34 : f32 to vector<8x1xf32>
    %66 = arith.addf %64, %65 : vector<8x1xf32>
    %67 = math.rsqrt %66 : vector<8x1xf32>
    %68 = vector.broadcast %67 : vector<8x1xf32> to vector<8x64xf32>
    %69 = arith.mulf %59, %68 : vector<8x64xf32>
    %70 = vector.broadcast %48 : vector<1x64xf32> to vector<8x64xf32>
    %71 = arith.mulf %69, %70 : vector<8x64xf32>
    %72 = vector.broadcast %49 : vector<1x64xf32> to vector<8x64xf32>
    %73 = arith.addf %71, %72 : vector<8x64xf32>
    %c0_35 = arith.constant 0 : index
    %c0_36 = arith.constant 0 : index
    %74 = vector.load %arg4[%c0_35, %c0_36] : memref<64x32xf32, #tpu.memory_space<vmem>>, vector<64x32xf32>
    %cst_37 = arith.constant dense<0.000000e+00> : vector<8x32xf32>
    %75 = tpu.matmul %73, %74, %cst_37 {dimension_numbers = #tpu.dot_dimension_numbers<[1], [0], [0], [1], [0, 0, 1, 1], [], []>} : vector<8x64xf32>, vector<64x32xf32>, vector<8x32xf32> -> vector<8x32xf32>
    %76 = vector.broadcast %50 : vector<1x32xf32> to vector<8x32xf32>
    %77 = arith.addf %75, %76 : vector<8x32xf32>
    %cst_38 = arith.constant 0.000000e+00 : f32
    %78 = vector.broadcast %cst_38 : f32 to vector<8x32xf32>
    %79 = arith.maximumf %77, %78 : vector<8x32xf32>
    %c0_39 = arith.constant 0 : index
    %c0_40 = arith.constant 0 : index
    %80 = vector.load %arg6[%c0_39, %c0_40] : memref<32x16xf32, #tpu.memory_space<vmem>>, vector<32x16xf32>
    %cst_41 = arith.constant dense<0.000000e+00> : vector<8x16xf32>
    %81 = tpu.matmul %79, %80, %cst_41 {dimension_numbers = #tpu.dot_dimension_numbers<[1], [0], [0], [1], [0, 0, 1, 1], [], []>} : vector<8x32xf32>, vector<32x16xf32>, vector<8x16xf32> -> vector<8x16xf32>
    %82 = vector.broadcast %51 : vector<1x16xf32> to vector<8x16xf32>
    %83 = arith.addf %81, %82 : vector<8x16xf32>
    %cst_42 = arith.constant 0.000000e+00 : f32
    %84 = vector.broadcast %cst_42 : f32 to vector<8x16xf32>
    %85 = arith.maximumf %83, %84 : vector<8x16xf32>
    %86 = vector.broadcast %52 : vector<1x16xf32> to vector<8x16xf32>
    %87 = arith.mulf %85, %86 : vector<8x16xf32>
    %cst_43 = arith.constant dense<0.000000e+00> : vector<8xf32>
    %88 = vector.multi_reduction <add>, %87, %cst_43 [1] : vector<8x16xf32> to vector<8xf32>
    %89 = vector.shape_cast %88 : vector<8xf32> to vector<8x1xf32>
    %90 = vector.broadcast %47 : f32 to vector<8x1xf32>
    %91 = arith.addf %89, %90 : vector<8x1xf32>
    %cst_44 = arith.constant 0.000000e+00 : f32
    %92 = vector.broadcast %cst_44 : f32 to vector<8x1xf32>
    %93 = arith.maximumf %91, %92 : vector<8x1xf32>
    %c2_45 = arith.constant 2 : index
    %94 = memref.load %arg8[%c2_45] : memref<3xf32, #tpu.memory_space<smem>>
    %95 = vector.broadcast %94 : f32 to vector<8x1xf32>
    %96 = arith.mulf %95, %46 : vector<8x1xf32>
    %cst_46 = arith.constant 1.000000e+00 : f32
    %97 = arith.subf %cst_46, %94 : f32
    %98 = vector.broadcast %97 : f32 to vector<8x1xf32>
    %99 = arith.mulf %98, %93 : vector<8x1xf32>
    %100 = arith.addf %96, %99 : vector<8x1xf32>
    %101 = vector.shape_cast %100 : vector<8x1xf32> to vector<8x1xf32>
    %102 = vector.broadcast %101 : vector<8x1xf32> to vector<8x128xf32>
    %c0_47 = arith.constant 0 : index
    %c0_48 = arith.constant 0 : index
    %103 = vector.load %arg9[%c0_47, %c0_48] : memref<8x128xf32, #tpu.memory_space<vmem>>, vector<8x128xf32>
    tpu.vector_store %arg9[%c0_47, %c0_48], %102 {strides = array<i32>} : memref<8x128xf32, #tpu.memory_space<vmem>>, vector<8x128xf32>,
    return
  }
  func.func @transform_0(%arg0: i32) -> (i32, i32) {
    %c0_i32 = arith.constant 0 : i32
    %c0_i32_0 = arith.constant 0 : i32
    return %arg0, %c0_i32 : i32, i32
  }
  func.func @transform_1(%arg0: i32) -> (i32, i32) {
    %c0_i32 = arith.constant 0 : i32
    %c0_i32_0 = arith.constant 0 : i32
    return %arg0, %c0_i32 : i32, i32
  }
  func.func @transform_2(%arg0: i32) -> (i32, i32) {
    %c0_i32 = arith.constant 0 : i32
    %c0_i32_0 = arith.constant 0 : i32
    %c0_i32_1 = arith.constant 0 : i32
    return %c0_i32, %c0_i32_0 : i32, i32
  }
  func.func @transform_3(%arg0: i32) -> (i32, i32) {
    %c0_i32 = arith.constant 0 : i32
    %c0_i32_0 = arith.constant 0 : i32
    %c0_i32_1 = arith.constant 0 : i32
    return %c0_i32, %c0_i32_0 : i32, i32
  }
  func.func @transform_4(%arg0: i32) -> (i32, i32) {
    %c0_i32 = arith.constant 0 : i32
    %c0_i32_0 = arith.constant 0 : i32
    %c0_i32_1 = arith.constant 0 : i32
    return %c0_i32, %c0_i32_0 : i32, i32
  }
  func.func @transform_5(%arg0: i32) -> (i32, i32) {
    %c0_i32 = arith.constant 0 : i32
    %c0_i32_0 = arith.constant 0 : i32
    %c0_i32_1 = arith.constant 0 : i32
    return %c0_i32, %c0_i32_0 : i32, i32
  }
  func.func @transform_6(%arg0: i32) -> (i32, i32) {
    %c0_i32 = arith.constant 0 : i32
    %c0_i32_0 = arith.constant 0 : i32
    %c0_i32_1 = arith.constant 0 : i32
    return %c0_i32, %c0_i32_0 : i32, i32
  }
  func.func @transform_7(%arg0: i32) -> i32 {
    %c0_i32 = arith.constant 0 : i32
    %c0_i32_0 = arith.constant 0 : i32
    return %c0_i32 : i32
  }
  func.func @transform_8(%arg0: i32) -> (i32, i32) {
    %c0_i32 = arith.constant 0 : i32
    %c0_i32_0 = arith.constant 0 : i32
    return %arg0, %c0_i32 : i32, i32
  }
}

module attributes {stable_mosaic.version = 11 : i64} {
  func.func @_regressor_kernel(%arg0: i32, %arg1: memref<8x64xf32, #tpu.memory_space<vmem>>, %arg2: memref<8x64xf32, #tpu.memory_space<vmem>>, %arg3: memref<64x32xf32, #tpu.memory_space<vmem>>, %arg4: memref<64x32xf32, #tpu.memory_space<vmem>>, %arg5: memref<32x16xf32, #tpu.memory_space<vmem>>, %arg6: memref<32x16xf32, #tpu.memory_space<vmem>>, %arg7: memref<10x128xf32, #tpu.memory_space<vmem>>, %arg8: memref<3xf32, #tpu.memory_space<smem>>, %arg9: memref<8x128xf32, #tpu.memory_space<vmem>>) attributes {dimension_semantics = [#tpu.dimension_semantics<parallel>], iteration_bounds = array<i64: 1>, scalar_prefetch = 0 : i64, scratch_operands = 0 : i64, tpu.core_type = #tpu.core_type<tc>, window_params = [{transform_indices = @transform_0, window_bounds = array<i64: 8, 64>}, {transform_indices = @transform_1, window_bounds = array<i64: 8, 64>}, {pipeline_mode = #tpu.pipeline_mode<synchronous>, transform_indices = @transform_2, window_bounds = array<i64: 64, 32>}, {pipeline_mode = #tpu.pipeline_mode<synchronous>, transform_indices = @transform_3, window_bounds = array<i64: 64, 32>}, {pipeline_mode = #tpu.pipeline_mode<synchronous>, transform_indices = @transform_4, window_bounds = array<i64: 32, 16>}, {pipeline_mode = #tpu.pipeline_mode<synchronous>, transform_indices = @transform_5, window_bounds = array<i64: 32, 16>}, {pipeline_mode = #tpu.pipeline_mode<synchronous>, transform_indices = @transform_6, window_bounds = array<i64: 10, 128>}, {transform_indices = @transform_7, window_bounds = array<i64: 3>}, {transform_indices = @transform_8, window_bounds = array<i64: 8, 128>}]} {
    %c0 = arith.constant 0 : index
    %0 = memref.load %arg8[%c0] : memref<3xf32, #tpu.memory_space<smem>>
    %c0_0 = arith.constant 0 : index
    %c0_1 = arith.constant 0 : index
    %1 = vector.load %arg7[%c0_0, %c0_1] : memref<10x128xf32, #tpu.memory_space<vmem>>, vector<1x64xf32>
    %c1 = arith.constant 1 : index
    %c0_2 = arith.constant 0 : index
    %2 = vector.load %arg7[%c1, %c0_2] : memref<10x128xf32, #tpu.memory_space<vmem>>, vector<1x64xf32>
    %c2 = arith.constant 2 : index
    %c0_3 = arith.constant 0 : index
    %3 = vector.load %arg7[%c2, %c0_3] : memref<10x128xf32, #tpu.memory_space<vmem>>, vector<1x32xf32>
    %c3 = arith.constant 3 : index
    %c0_4 = arith.constant 0 : index
    %4 = vector.load %arg7[%c3, %c0_4] : memref<10x128xf32, #tpu.memory_space<vmem>>, vector<1x16xf32>
    %c4 = arith.constant 4 : index
    %c0_5 = arith.constant 0 : index
    %5 = vector.load %arg7[%c4, %c0_5] : memref<10x128xf32, #tpu.memory_space<vmem>>, vector<1x16xf32>
    %c0_6 = arith.constant 0 : index
    %c0_7 = arith.constant 0 : index
    %6 = vector.load %arg1[%c0_6, %c0_7] : memref<8x64xf32, #tpu.memory_space<vmem>>, vector<8x64xf32>
    %cst = arith.constant dense<0.000000e+00> : vector<8xf32>
    %7 = vector.multi_reduction <add>, %6, %cst [1] : vector<8x64xf32> to vector<8xf32>
    %8 = vector.shape_cast %7 : vector<8xf32> to vector<8x1xf32>
    %cst_8 = arith.constant 6.400000e+01 : f32
    %9 = vector.broadcast %cst_8 : f32 to vector<8x1xf32>
    %10 = arith.divf %8, %9 : vector<8x1xf32>
    %11 = vector.broadcast %10 : vector<8x1xf32> to vector<8x64xf32>
    %12 = arith.subf %6, %11 : vector<8x64xf32>
    %13 = arith.mulf %12, %12 : vector<8x64xf32>
    %cst_9 = arith.constant dense<0.000000e+00> : vector<8xf32>
    %14 = vector.multi_reduction <add>, %13, %cst_9 [1] : vector<8x64xf32> to vector<8xf32>
    %15 = vector.shape_cast %14 : vector<8xf32> to vector<8x1xf32>
    %cst_10 = arith.constant 6.400000e+01 : f32
    %16 = vector.broadcast %cst_10 : f32 to vector<8x1xf32>
    %17 = arith.divf %15, %16 : vector<8x1xf32>
    %cst_11 = arith.constant 9.99999974E-6 : f32
    %18 = vector.broadcast %cst_11 : f32 to vector<8x1xf32>
    %19 = arith.addf %17, %18 : vector<8x1xf32>
    %20 = math.rsqrt %19 : vector<8x1xf32>
    %21 = vector.broadcast %20 : vector<8x1xf32> to vector<8x64xf32>
    %22 = arith.mulf %12, %21 : vector<8x64xf32>
    %23 = vector.broadcast %1 : vector<1x64xf32> to vector<8x64xf32>
    %24 = arith.mulf %22, %23 : vector<8x64xf32>
    %25 = vector.broadcast %2 : vector<1x64xf32> to vector<8x64xf32>
    %26 = arith.addf %24, %25 : vector<8x64xf32>
    %c0_12 = arith.constant 0 : index
    %c0_13 = arith.constant 0 : index
    %27 = vector.load %arg3[%c0_12, %c0_13] : memref<64x32xf32, #tpu.memory_space<vmem>>, vector<64x32xf32>
    %cst_14 = arith.constant dense<0.000000e+00> : vector<8x32xf32>
    %28 = tpu.matmul %26, %27, %cst_14 {dimension_numbers = #tpu.dot_dimension_numbers<[1], [0], [0], [1], [0, 0, 1, 1], [], []>} : vector<8x64xf32>, vector<64x32xf32>, vector<8x32xf32> -> vector<8x32xf32>
    %29 = vector.broadcast %3 : vector<1x32xf32> to vector<8x32xf32>
    %30 = arith.addf %28, %29 : vector<8x32xf32>
    %cst_15 = arith.constant 0.000000e+00 : f32
    %31 = vector.broadcast %cst_15 : f32 to vector<8x32xf32>
    %32 = arith.maximumf %30, %31 : vector<8x32xf32>
    %c0_16 = arith.constant 0 : index
    %c0_17 = arith.constant 0 : index
    %33 = vector.load %arg5[%c0_16, %c0_17] : memref<32x16xf32, #tpu.memory_space<vmem>>, vector<32x16xf32>
    %cst_18 = arith.constant dense<0.000000e+00> : vector<8x16xf32>
    %34 = tpu.matmul %32, %33, %cst_18 {dimension_numbers = #tpu.dot_dimension_numbers<[1], [0], [0], [1], [0, 0, 1, 1], [], []>} : vector<8x32xf32>, vector<32x16xf32>, vector<8x16xf32> -> vector<8x16xf32>
    %35 = vector.broadcast %4 : vector<1x16xf32> to vector<8x16xf32>
    %36 = arith.addf %34, %35 : vector<8x16xf32>
    %cst_19 = arith.constant 0.000000e+00 : f32
    %37 = vector.broadcast %cst_19 : f32 to vector<8x16xf32>
    %38 = arith.maximumf %36, %37 : vector<8x16xf32>
    %39 = vector.broadcast %5 : vector<1x16xf32> to vector<8x16xf32>
    %40 = arith.mulf %38, %39 : vector<8x16xf32>
    %cst_20 = arith.constant dense<0.000000e+00> : vector<8xf32>
    %41 = vector.multi_reduction <add>, %40, %cst_20 [1] : vector<8x16xf32> to vector<8xf32>
    %42 = vector.shape_cast %41 : vector<8xf32> to vector<8x1xf32>
    %43 = vector.broadcast %0 : f32 to vector<8x1xf32>
    %44 = arith.addf %42, %43 : vector<8x1xf32>
    %cst_21 = arith.constant 0.000000e+00 : f32
    %45 = vector.broadcast %cst_21 : f32 to vector<8x1xf32>
    %46 = arith.maximumf %44, %45 : vector<8x1xf32>
    %c1_22 = arith.constant 1 : index
    %47 = memref.load %arg8[%c1_22] : memref<3xf32, #tpu.memory_space<smem>>
    %c5 = arith.constant 5 : index
    %c0_23 = arith.constant 0 : index
    %48 = vector.load %arg7[%c5, %c0_23] : memref<10x128xf32, #tpu.memory_space<vmem>>, vector<1x64xf32>
    %c6 = arith.constant 6 : index
    %c0_24 = arith.constant 0 : index
    %49 = vector.load %arg7[%c6, %c0_24] : memref<10x128xf32, #tpu.memory_space<vmem>>, vector<1x64xf32>
    %c7 = arith.constant 7 : index
    %c0_25 = arith.constant 0 : index
    %50 = vector.load %arg7[%c7, %c0_25] : memref<10x128xf32, #tpu.memory_space<vmem>>, vector<1x32xf32>
    %c8 = arith.constant 8 : index
    %c0_26 = arith.constant 0 : index
    %51 = vector.load %arg7[%c8, %c0_26] : memref<10x128xf32, #tpu.memory_space<vmem>>, vector<1x16xf32>
    %c9 = arith.constant 9 : index
    %c0_27 = arith.constant 0 : index
    %52 = vector.load %arg7[%c9, %c0_27] : memref<10x128xf32, #tpu.memory_space<vmem>>, vector<1x16xf32>
    %c0_28 = arith.constant 0 : index
    %c0_29 = arith.constant 0 : index
    %53 = vector.load %arg2[%c0_28, %c0_29] : memref<8x64xf32, #tpu.memory_space<vmem>>, vector<8x64xf32>
    %cst_30 = arith.constant dense<0.000000e+00> : vector<8xf32>
    %54 = vector.multi_reduction <add>, %53, %cst_30 [1] : vector<8x64xf32> to vector<8xf32>
    %55 = vector.shape_cast %54 : vector<8xf32> to vector<8x1xf32>
    %cst_31 = arith.constant 6.400000e+01 : f32
    %56 = vector.broadcast %cst_31 : f32 to vector<8x1xf32>
    %57 = arith.divf %55, %56 : vector<8x1xf32>
    %58 = vector.broadcast %57 : vector<8x1xf32> to vector<8x64xf32>
    %59 = arith.subf %53, %58 : vector<8x64xf32>
    %60 = arith.mulf %59, %59 : vector<8x64xf32>
    %cst_32 = arith.constant dense<0.000000e+00> : vector<8xf32>
    %61 = vector.multi_reduction <add>, %60, %cst_32 [1] : vector<8x64xf32> to vector<8xf32>
    %62 = vector.shape_cast %61 : vector<8xf32> to vector<8x1xf32>
    %cst_33 = arith.constant 6.400000e+01 : f32
    %63 = vector.broadcast %cst_33 : f32 to vector<8x1xf32>
    %64 = arith.divf %62, %63 : vector<8x1xf32>
    %cst_34 = arith.constant 9.99999974E-6 : f32
    %65 = vector.broadcast %cst_34 : f32 to vector<8x1xf32>
    %66 = arith.addf %64, %65 : vector<8x1xf32>
    %67 = math.rsqrt %66 : vector<8x1xf32>
    %68 = vector.broadcast %67 : vector<8x1xf32> to vector<8x64xf32>
    %69 = arith.mulf %59, %68 : vector<8x64xf32>
    %70 = vector.broadcast %48 : vector<1x64xf32> to vector<8x64xf32>
    %71 = arith.mulf %69, %70 : vector<8x64xf32>
    %72 = vector.broadcast %49 : vector<1x64xf32> to vector<8x64xf32>
    %73 = arith.addf %71, %72 : vector<8x64xf32>
    %c0_35 = arith.constant 0 : index
    %c0_36 = arith.constant 0 : index
    %74 = vector.load %arg4[%c0_35, %c0_36] : memref<64x32xf32, #tpu.memory_space<vmem>>, vector<64x32xf32>
    %cst_37 = arith.constant dense<0.000000e+00> : vector<8x32xf32>
    %75 = tpu.matmul %73, %74, %cst_37 {dimension_numbers = #tpu.dot_dimension_numbers<[1], [0], [0], [1], [0, 0, 1, 1], [], []>} : vector<8x64xf32>, vector<64x32xf32>, vector<8x32xf32> -> vector<8x32xf32>
    %76 = vector.broadcast %50 : vector<1x32xf32> to vector<8x32xf32>
    %77 = arith.addf %75, %76 : vector<8x32xf32>
    %cst_38 = arith.constant 0.000000e+00 : f32
    %78 = vector.broadcast %cst_38 : f32 to vector<8x32xf32>
    %79 = arith.maximumf %77, %78 : vector<8x32xf32>
    %c0_39 = arith.constant 0 : index
    %c0_40 = arith.constant 0 : index
    %80 = vector.load %arg6[%c0_39, %c0_40] : memref<32x16xf32, #tpu.memory_space<vmem>>, vector<32x16xf32>
    %cst_41 = arith.constant dense<0.000000e+00> : vector<8x16xf32>
    %81 = tpu.matmul %79, %80, %cst_41 {dimension_numbers = #tpu.dot_dimension_numbers<[1], [0], [0], [1], [0, 0, 1, 1], [], []>} : vector<8x32xf32>, vector<32x16xf32>, vector<8x16xf32> -> vector<8x16xf32>
    %82 = vector.broadcast %51 : vector<1x16xf32> to vector<8x16xf32>
    %83 = arith.addf %81, %82 : vector<8x16xf32>
    %cst_42 = arith.constant 0.000000e+00 : f32
    %84 = vector.broadcast %cst_42 : f32 to vector<8x16xf32>
    %85 = arith.maximumf %83, %84 : vector<8x16xf32>
    %86 = vector.broadcast %52 : vector<1x16xf32> to vector<8x16xf32>
    %87 = arith.mulf %85, %86 : vector<8x16xf32>
    %cst_43 = arith.constant dense<0.000000e+00> : vector<8xf32>
    %88 = vector.multi_reduction <add>, %87, %cst_43 [1] : vector<8x16xf32> to vector<8xf32>
    %89 = vector.shape_cast %88 : vector<8xf32> to vector<8x1xf32>
    %90 = vector.broadcast %47 : f32 to vector<8x1xf32>
    %91 = arith.addf %89, %90 : vector<8x1xf32>
    %cst_44 = arith.constant 0.000000e+00 : f32
    %92 = vector.broadcast %cst_44 : f32 to vector<8x1xf32>
    %93 = arith.maximumf %91, %92 : vector<8x1xf32>
    %c2_45 = arith.constant 2 : index
    %94 = memref.load %arg8[%c2_45] : memref<3xf32, #tpu.memory_space<smem>>
    %95 = vector.broadcast %94 : f32 to vector<8x1xf32>
    %96 = arith.mulf %95, %46 : vector<8x1xf32>
    %cst_46 = arith.constant 1.000000e+00 : f32
    %97 = arith.subf %cst_46, %94 : f32
    %98 = vector.broadcast %97 : f32 to vector<8x1xf32>
    %99 = arith.mulf %98, %93 : vector<8x1xf32>
    %100 = arith.addf %96, %99 : vector<8x1xf32>
    %101 = vector.shape_cast %100 : vector<8x1xf32> to vector<8x1xf32>
    %102 = vector.broadcast %101 : vector<8x1xf32> to vector<8x128xf32>
    %c0_47 = arith.constant 0 : index
    %c0_48 = arith.constant 0 : index
    %103 = vector.load %arg9[%c0_47, %c0_48] : memref<8x128xf32, #tpu.memory_space<vmem>>, vector<8x128xf32>
    tpu.vector_store %arg9[%c0_47, %c0_48], %102 {strides = array<i32>} : memref<8x128xf32, #tpu.memory_space<vmem>>, vector<8x128xf32>,
    return
  }
  func.func @transform_0(%arg0: i32) -> (i32, i32) {
    %c0_i32 = arith.constant 0 : i32
    %c0_i32_0 = arith.constant 0 : i32
    return %arg0, %c0_i32 : i32, i32
  }
  func.func @transform_1(%arg0: i32) -> (i32, i32) {
    %c0_i32 = arith.constant 0 : i32
    %c0_i32_0 = arith.constant 0 : i32
    return %arg0, %c0_i32 : i32, i32
  }
  func.func @transform_2(%arg0: i32) -> (i32, i32) {
    %c0_i32 = arith.constant 0 : i32
    %c0_i32_0 = arith.constant 0 : i32
    %c0_i32_1 = arith.constant 0 : i32
    return %c0_i32, %c0_i32_0 : i32, i32
  }
  func.func @transform_3(%arg0: i32) -> (i32, i32) {
    %c0_i32 = arith.constant 0 : i32
    %c0_i32_0 = arith.constant 0 : i32
    %c0_i32_1 = arith.constant 0 : i32
    return %c0_i32, %c0_i32_0 : i32, i32
  }
  func.func @transform_4(%arg0: i32) -> (i32, i32) {
    %c0_i32 = arith.constant 0 : i32
    %c0_i32_0 = arith.constant 0 : i32
    %c0_i32_1 = arith.constant 0 : i32
    return %c0_i32, %c0_i32_0 : i32, i32
  }
  func.func @transform_5(%arg0: i32) -> (i32, i32) {
    %c0_i32 = arith.constant 0 : i32
    %c0_i32_0 = arith.constant 0 : i32
    %c0_i32_1 = arith.constant 0 : i32
    return %c0_i32, %c0_i32_0 : i32, i32
  }
  func.func @transform_6(%arg0: i32) -> (i32, i32) {
    %c0_i32 = arith.constant 0 : i32
    %c0_i32_0 = arith.constant 0 : i32
    %c0_i32_1 = arith.constant 0 : i32
    return %c0_i32, %c0_i32_0 : i32, i32
  }
  func.func @transform_7(%arg0: i32) -> i32 {
    %c0_i32 = arith.constant 0 : i32
    %c0_i32_0 = arith.constant 0 : i32
    return %c0_i32 : i32
  }
  func.func @transform_8(%arg0: i32) -> (i32, i32) {
    %c0_i32 = arith.constant 0 : i32
    %c0_i32_0 = arith.constant 0 : i32
    return %arg0, %c0_i32 : i32, i32
  }
}

</mosaic_0001>

<llo_original>
// kernel: tpu_custom_call.1
$region0: #{tpu_custom_call.1}
  #allocation0 [shape = 'u32[]', space=smem, size = 0x4, offset = 0x4, fixed_abs, tag = 'smem constant byte address 0x4 - core index']
  #allocation1 [shape = 'u32[144,128]{1,0:T(1,128)}', space=vmem, size = 0x12000, scoped, tag = 'internal scratch']
  %s0 = inlined_call_operand.vmem [shape: f32[8,64], index: 0, kind: input, shape index: {}]
  %s1 = inlined_call_operand.vmem [shape: f32[8,64], index: 1, kind: input, shape index: {}]
  %s2 = inlined_call_operand.vmem [shape: f32[64,32], index: 2, kind: input, shape index: {}]
  %s3 = inlined_call_operand.vmem [shape: f32[64,32], index: 3, kind: input, shape index: {}]
  %s4 = inlined_call_operand.vmem [shape: f32[32,16], index: 4, kind: input, shape index: {}]
  %s5 = inlined_call_operand.vmem [shape: f32[32,16], index: 5, kind: input, shape index: {}]
  %s6 = inlined_call_operand.vmem [shape: f32[10,128], index: 6, kind: input, shape index: {}]
  %s7 = inlined_call_operand.vmem [shape: f32[3], index: 7, kind: input, shape index: {}]
  %s8 = inlined_call_operand.hbm [shape: f32[8,128], index: 8, kind: output, shape index: {}]
  %s9 = sld [smem:[#allocation0]]
  $region46: #{tpu_custom_call.1} parent=0
    _
  %s11 = ssub.s32 1, %s9
  %s12 = scalar_select 0, %s11, %s9
  $region1: #{tpu_custom_call.1} parent=0
    #allocation2 [shape = 'u8[512]{0}', space=smem, size = 0x200, scoped, tag = 'input window, operand 7, single buffered']
    #allocation3 [shape = 's32[1]{0}', space=sflag, size = 0x4, scoped, tag = 'scoped memory for tpu_custom_call.1']
    #allocation4 [shape = 's32[1]{0}', space=sflag, size = 0x4, scoped, tag = 'scoped memory for tpu_custom_call.1']
    #allocation5 [shape = 'u8[4096]{0}', space=vmem, size = 0x1000, scoped, tag = 'output window, operand 0, single buffered']
    %13 = vsyncpa [#allocation4], 0
    %14 = vsyncpa [#allocation3], 0
    // Predicated region
    $region2: #{tpu_custom_call.1} parent=1 // pred_check
      _
    $region3: #{tpu_custom_call.1} parent=1 // pred_check_branch
      %16 = sbr.rel (0) target = $region5
    $region4: #{tpu_custom_call.1} parent=1 // pred_region
      _
    $region5: #{tpu_custom_call.1} parent=1 // pred_fallthru
      _
    // Predicated region
    $region6: #{tpu_custom_call.1} parent=1 // pred_check
      _
    $region7: #{tpu_custom_call.1} parent=1 // pred_check_branch
      %18 = sbr.rel (0) target = $region9
    $region8: #{tpu_custom_call.1} parent=1 // pred_region
      _
    $region9: #{tpu_custom_call.1} parent=1 // pred_fallthru
      _
    // Predicated region
    $region10: #{tpu_custom_call.1} parent=1 // pred_check
      _
    $region11: #{tpu_custom_call.1} parent=1 // pred_check_branch
      %20 = sbr.rel (0) target = $region13
    $region12: #{tpu_custom_call.1} parent=1 // pred_region
      _
    $region13: #{tpu_custom_call.1} parent=1 // pred_fallthru
      _
    // Predicated region
    $region14: #{tpu_custom_call.1} parent=1 // pred_check
      _
    $region15: #{tpu_custom_call.1} parent=1 // pred_check_branch
      %22 = sbr.rel (0) target = $region17
    $region16: #{tpu_custom_call.1} parent=1 // pred_region
      _
    $region17: #{tpu_custom_call.1} parent=1 // pred_fallthru
      _
    // Predicated region
    $region18: #{tpu_custom_call.1} parent=1 // pred_check
      _
    $region19: #{tpu_custom_call.1} parent=1 // pred_check_branch
      %24 = sbr.rel (0) target = $region21
    $region20: #{tpu_custom_call.1} parent=1 // pred_region
      _
    $region21: #{tpu_custom_call.1} parent=1 // pred_fallthru
      _
    // Predicated region
    $region22: #{tpu_custom_call.1} parent=1 // pred_check
      _
    $region23: #{tpu_custom_call.1} parent=1 // pred_check_branch
      %26 = sbr.rel (0) target = $region25
    $region24: #{tpu_custom_call.1} parent=1 // pred_region
      _
    $region25: #{tpu_custom_call.1} parent=1 // pred_fallthru
      _
    // Predicated region
    $region26: #{tpu_custom_call.1} parent=1 // pred_check
      _
    $region27: #{tpu_custom_call.1} parent=1 // pred_check_branch
      %28 = sbr.rel (0) target = $region29
    $region28: #{tpu_custom_call.1} parent=1 // pred_region
      _
    $region29: #{tpu_custom_call.1} parent=1 // pred_fallthru
      _
    // Predicated region
    $region30: #{tpu_custom_call.1} parent=1 // pred_check
      _
    $region31: #{tpu_custom_call.1} parent=1 // pred_check_branch
      %30 = sbr.rel (0) target = $region33
    $region32: #{tpu_custom_call.1} parent=1 // pred_region
      %s32 = ssub.s32 16, 16
      %33 = vsyncadd [#allocation4], %s32
      %s35 = sshll.u32 %s7, 4
      %s36 = int_to_ptr.vmem [resolvable:$true] %s35
      %38 = dma.vmem_to_smem %s36, 16, [#allocation2], [#allocation4]
    $region33: #{tpu_custom_call.1} parent=1 // pred_fallthru
      _
    // Predicated region
    $region34: #{tpu_custom_call.1} parent=1 // pred_check
      _
    $region35: #{tpu_custom_call.1} parent=1 // pred_check_branch
      %40 = sbr.rel (0) target = $region37
    $region36: #{tpu_custom_call.1} parent=1 // pred_region
      %41 = dma.done [#allocation4], 16
    $region37: #{tpu_custom_call.1} parent=1 // pred_fallthru
      _
    %42 = sfence
    %s43 = sld [smem:[#allocation2]]
    %v44 = vld [vmem:[%s6] sm:$0x1]
    %v45 = vld [vmem:[%s6 + $0x1] sm:$0x1]
    %v46 = vld [vmem:[%s6 + $0x2] sm:$0x1]
    %v47 = vld [vmem:[%s6 + $0x3] sm:$0x1]
    %v48 = vld [vmem:[%s6 + $0x4] sm:$0x1]
    %v49 = vld [vmem:[%s0] sm:$0xff]
    %vm50 = vcmask 523264
    %v51 = vsel %vm50, %v49, 0.0
    %52 = vadd.xlane.f32.xlu0 %v51
    %v53 = vpop.xlane.xlu0 %52
    %v54 = vrcp.pop 64.0
    %v55 = vmul.f32 %v53, %v54
    %v56 = vsub.f32 %v49, %v55
    %v57 = vmul.f32 %v56, %v56
    %v58 = vsel %vm50, %v57, 0.0
    %59 = vadd.xlane.f32.xlu0 %v58
    %v60 = vpop.xlane.xlu0 %59
    %v61 = vmul.f32 %v60, %v54
    %v62 = vadd.f32 %v61, 1e-05
    %v63 = vrsqrt.pop %v62
    %v64 = vmul.f32 %v56, %v63
    %v65 = vlaneseq
    %v66 = vshrl.u32 %v65, 7
    %v67 = vsub.s32 0, %v66
    %v68 = vrot.slane %v44, %v67
    %v69 = vmul.f32 %v64, %v68
    %v70 = vlaneseq
    %v71 = vshrl.u32 %v70, 7
    %v72 = vsub.s32 0, %v71
    %v73 = vrot.slane %v45, %v72
    %v74 = vadd.f32 %v69, %v73
    %v75 = vld [vmem:[%s2] sm:$0xff]
    %v76 = vld [vmem:[%s2 + $0x8] sm:$0xff]
    %v77 = vld [vmem:[%s2 + $0x10] sm:$0xff]
    %v78 = vld [vmem:[%s2 + $0x18] sm:$0xff]
    %v79 = vld [vmem:[%s2 + $0x20] sm:$0xff]
    %v80 = vld [vmem:[%s2 + $0x28] sm:$0xff]
    %v81 = vld [vmem:[%s2 + $0x30] sm:$0xff]
    %v82 = vld [vmem:[%s2 + $0x38] sm:$0xff]
    %v83 = vlaneseq
    %v84 = vshrl.u32 %v83, 7
    %v85 = vsub.s32 0, %v84
    %v86 = vrot.slane %v46, %v85
    %v88 = vsel %vm50, %v74, 0
    %90 = vmatprep.subr.mxu0 0.0
    %91 = vmatpush1.msra.mxu0 %v75
    %92 = vmatprep.subr.mxu0 0.0
    %93 = vmatpush1.msra.mxu0 %v76
    %94 = vmatprep.subr.mxu0 0.0
    %95 = vmatpush1.msra.mxu0 %v77
    %96 = vmatprep.subr.mxu0 0.0
    %97 = vmatpush1.msra.mxu0 %v78
    %98 = vmatprep.subr.mxu0 0.0
    %99 = vmatpush1.msra.mxu0 %v79
    %100 = vmatprep.subr.mxu0 0.0
    %101 = vmatpush1.msra.mxu0 %v80
    %102 = vmatprep.subr.mxu0 0.0
    %103 = vmatpush1.msra.mxu0 %v81
    %104 = vmatprep.subr.mxu0 0.0
    %105 = vmatpush1.msra.mxu0 %v82
    %106 = vmatprep.subr.mxu0 0.0
    %107 = vmatpush1.msra.mxu0 0.0
    %108 = vmatprep.subr.mxu0 0.0
    %109 = vmatpush1.msra.mxu0 0.0
    %110 = vmatprep.subr.mxu0 0.0
    %111 = vmatpush1.msra.mxu0 0.0
    %112 = vmatprep.subr.mxu0 0.0
    %113 = vmatpush1.msra.mxu0 0.0
    %114 = vmatprep.subr.mxu0 0.0
    %115 = vmatpush1.msra.mxu0 0.0
    %116 = vmatprep.subr.mxu0 0.0
    %117 = vmatpush1.msra.mxu0 0.0
    %118 = vmatprep.subr.mxu0 0.0
    %119 = vmatpush1.msra.mxu0 0.0
    %120 = vmatprep.subr.mxu0 0.0
    %121 = vmatpush1.msra.mxu0 0.0
    %122 = vmatprep.subr.mxu0 0.0
    %123 = vmatpush1.msra.mxu0 0.0
    %124 = vmatprep.subr.mxu0 0.0
    %125 = vmatpush1.msra.mxu0 0.0
    %126 = vmatprep.subr.mxu0 0.0
    %127 = vmatpush1.msra.mxu0 0.0
    %128 = vmatprep.subr.mxu0 0.0
    %129 = vmatpush1.msra.mxu0 0.0
    %130 = vmatprep.subr.mxu0 0.0
    %131 = vmatpush1.msra.mxu0 0.0
    %132 = vmatprep.subr.mxu0 0.0
    %133 = vmatpush1.msra.mxu0 0.0
    %134 = vmatprep.subr.mxu0 0.0
    %135 = vmatpush1.msra.mxu0 0.0
    %136 = vmatprep.subr.mxu0 0.0
    %137 = vmatpush1.msra.mxu0 0.0
    %138 = vmatprep.subr.mxu0 0.0
    %139 = vmatpush1.msra.mxu0 0.0
    %140 = vmatprep.subr.mxu0 0.0
    %141 = vmatpush1.msra.mxu0 0.0
    %142 = vmatprep.subr.mxu0 0.0
    %143 = vmatpush1.msra.mxu0 0.0
    %144 = vmatprep.subr.mxu0 0.0
    %145 = vmatpush1.msra.mxu0 0.0
    %146 = vmatprep.subr.mxu0 0.0
    %147 = vmatpush1.msra.mxu0 0.0
    %148 = vmatprep.subr.mxu0 0.0
    %149 = vmatpush1.msra.mxu0 0.0
    %150 = vmatprep.subr.mxu0 0.0
    %151 = vmatpush1.msra.mxu0 0.0
    %152 = vmatprep.subr.mxu0 0.0
    %153 = vmatpush1.msra.mxu0 0.0
    %154 = vmatprep.mubr.f32.mxu0 0.0
    %155 = vmatmul.mubr.f32.gmra.mrb[0].mxu0 %v88
    %v156 = vpop.f32.mrb[0].mxu0
    %v157 = vadd.f32 %v86, %v156
    %v158 = vpop.f32.mrb[0].mxu0
    %159 = vdwg.mxu0
    %v160 = vmax.f32 %v157, 0.0
    %v161 = vld [vmem:[%s4] sm:$0xff]
    %v162 = vld [vmem:[%s4 + $0x8] sm:$0xff]
    %v163 = vld [vmem:[%s4 + $0x10] sm:$0xff]
    %v164 = vld [vmem:[%s4 + $0x18] sm:$0xff]
    %v165 = vlaneseq
    %v166 = vshrl.u32 %v165, 7
    %v167 = vsub.s32 0, %v166
    %v168 = vrot.slane %v47, %v167
    %vm169 = vcmask 261120
    %v171 = vsel %vm169, %v160, 0
    %173 = vmatprep.subr.mxu0 0.0
    %174 = vmatpush1.msra.mxu0 %v161
    %175 = vmatprep.subr.mxu0 0.0
    %176 = vmatpush1.msra.mxu0 %v162
    %177 = vmatprep.subr.mxu0 0.0
    %178 = vmatpush1.msra.mxu0 %v163
    %179 = vmatprep.subr.mxu0 0.0
    %180 = vmatpush1.msra.mxu0 %v164
    %181 = vmatprep.subr.mxu0 0.0
    %182 = vmatpush1.msra.mxu0 0.0
    %183 = vmatprep.subr.mxu0 0.0
    %184 = vmatpush1.msra.mxu0 0.0
    %185 = vmatprep.subr.mxu0 0.0
    %186 = vmatpush1.msra.mxu0 0.0
    %187 = vmatprep.subr.mxu0 0.0
    %188 = vmatpush1.msra.mxu0 0.0
    %189 = vmatprep.subr.mxu0 0.0
    %190 = vmatpush1.msra.mxu0 0.0
    %191 = vmatprep.subr.mxu0 0.0
    %192 = vmatpush1.msra.mxu0 0.0
    %193 = vmatprep.subr.mxu0 0.0
    %194 = vmatpush1.msra.mxu0 0.0
    %195 = vmatprep.subr.mxu0 0.0
    %196 = vmatpush1.msra.mxu0 0.0
    %197 = vmatprep.subr.mxu0 0.0
    %198 = vmatpush1.msra.mxu0 0.0
    %199 = vmatprep.subr.mxu0 0.0
    %200 = vmatpush1.msra.mxu0 0.0
    %201 = vmatprep.subr.mxu0 0.0
    %202 = vmatpush1.msra.mxu0 0.0
    %203 = vmatprep.subr.mxu0 0.0
    %204 = vmatpush1.msra.mxu0 0.0
    %205 = vmatprep.subr.mxu0 0.0
    %206 = vmatpush1.msra.mxu0 0.0
    %207 = vmatprep.subr.mxu0 0.0
    %208 = vmatpush1.msra.mxu0 0.0
    %209 = vmatprep.subr.mxu0 0.0
    %210 = vmatpush1.msra.mxu0 0.0
    %211 = vmatprep.subr.mxu0 0.0
    %212 = vmatpush1.msra.mxu0 0.0
    %213 = vmatprep.subr.mxu0 0.0
    %214 = vmatpush1.msra.mxu0 0.0
    %215 = vmatprep.subr.mxu0 0.0
    %216 = vmatpush1.msra.mxu0 0.0
    %217 = vmatprep.subr.mxu0 0.0
    %218 = vmatpush1.msra.mxu0 0.0
    %219 = vmatprep.subr.mxu0 0.0
    %220 = vmatpush1.msra.mxu0 0.0
    %221 = vmatprep.subr.mxu0 0.0
    %222 = vmatpush1.msra.mxu0 0.0
    %223 = vmatprep.subr.mxu0 0.0
    %224 = vmatpush1.msra.mxu0 0.0
    %225 = vmatprep.subr.mxu0 0.0
    %226 = vmatpush1.msra.mxu0 0.0
    %227 = vmatprep.subr.mxu0 0.0
    %228 = vmatpush1.msra.mxu0 0.0
    %229 = vmatprep.subr.mxu0 0.0
    %230 = vmatpush1.msra.mxu0 0.0
    %231 = vmatprep.subr.mxu0 0.0
    %232 = vmatpush1.msra.mxu0 0.0
    %233 = vmatprep.subr.mxu0 0.0
    %234 = vmatpush1.msra.mxu0 0.0
    %235 = vmatprep.subr.mxu0 0.0
    %236 = vmatpush1.msra.mxu0 0.0
    %237 = vmatprep.mubr.f32.mxu0 0.0
    %238 = vmatmul.mubr.f32.gmra.mrb[0].mxu0 %v171
    %v239 = vpop.f32.mrb[0].mxu0
    %v240 = vadd.f32 %v168, %v239
    %v241 = vpop.f32.mrb[0].mxu0
    %242 = vdwg.mxu0
    %v243 = vmax.f32 %v240, 0.0
    %v244 = vlaneseq
    %v245 = vshrl.u32 %v244, 7
    %v246 = vsub.s32 0, %v245
    %v247 = vrot.slane %v48, %v246
    %v248 = vmul.f32 %v243, %v247
    %vm249 = vcmask 130048
    %v250 = vsel %vm249, %v248, 0.0
    %251 = vadd.xlane.f32.xlu0 %v250
    %v252 = vpop.xlane.xlu0 %251
    %v253 = vstv %s43
    %v254 = vadd.f32 %v252, %v253
    %v255 = vmax.f32 %v254, 0.0
    %s256 = sld [smem:[#allocation2 + $0x1]]
    %v257 = vld [vmem:[%s6 + $0x5] sm:$0x1]
    %v258 = vld [vmem:[%s6 + $0x6] sm:$0x1]
    %v259 = vld [vmem:[%s6 + $0x7] sm:$0x1]
    %v260 = vld [vmem:[%s6 + $0x8] sm:$0x1]
    %v261 = vld [vmem:[%s6 + $0x9] sm:$0x1]
    %v262 = vld [vmem:[%s1] sm:$0xff]
    %v263 = vsel %vm50, %v262, 0.0
    %264 = vadd.xlane.f32.xlu0 %v263
    %v265 = vpop.xlane.xlu0 %264
    %v266 = vmul.f32 %v265, %v54
    %v267 = vsub.f32 %v262, %v266
    %v268 = vmul.f32 %v267, %v267
    %v269 = vsel %vm50, %v268, 0.0
    %270 = vadd.xlane.f32.xlu0 %v269
    %v271 = vpop.xlane.xlu0 %270
    %v272 = vmul.f32 %v271, %v54
    %v273 = vadd.f32 %v272, 1e-05
    %v274 = vrsqrt.pop %v273
    %v275 = vmul.f32 %v267, %v274
    %v276 = vlaneseq
    %v277 = vshrl.u32 %v276, 7
    %v278 = vsub.s32 0, %v277
    %v279 = vrot.slane %v257, %v278
    %v280 = vmul.f32 %v275, %v279
    %v281 = vlaneseq
    %v282 = vshrl.u32 %v281, 7
    %v283 = vsub.s32 0, %v282
    %v284 = vrot.slane %v258, %v283
    %v285 = vadd.f32 %v280, %v284
    %v286 = vld [vmem:[%s3] sm:$0xff]
    %v287 = vld [vmem:[%s3 + $0x8] sm:$0xff]
    %v288 = vld [vmem:[%s3 + $0x10] sm:$0xff]
    %v289 = vld [vmem:[%s3 + $0x18] sm:$0xff]
    %v290 = vld [vmem:[%s3 + $0x20] sm:$0xff]
    %v291 = vld [vmem:[%s3 + $0x28] sm:$0xff]
    %v292 = vld [vmem:[%s3 + $0x30] sm:$0xff]
    %v293 = vld [vmem:[%s3 + $0x38] sm:$0xff]
    %v294 = vlaneseq
    %v295 = vshrl.u32 %v294, 7
    %v296 = vsub.s32 0, %v295
    %v297 = vrot.slane %v259, %v296
    %v299 = vsel %vm50, %v285, 0
    %301 = vmatprep.subr.mxu0 0.0
    %302 = vmatpush1.msra.mxu0 %v286
    %303 = vmatprep.subr.mxu0 0.0
    %304 = vmatpush1.msra.mxu0 %v287
    %305 = vmatprep.subr.mxu0 0.0
    %306 = vmatpush1.msra.mxu0 %v288
    %307 = vmatprep.subr.mxu0 0.0
    %308 = vmatpush1.msra.mxu0 %v289
    %309 = vmatprep.subr.mxu0 0.0
    %310 = vmatpush1.msra.mxu0 %v290
    %311 = vmatprep.subr.mxu0 0.0
    %312 = vmatpush1.msra.mxu0 %v291
    %313 = vmatprep.subr.mxu0 0.0
    %314 = vmatpush1.msra.mxu0 %v292
    %315 = vmatprep.subr.mxu0 0.0
    %316 = vmatpush1.msra.mxu0 %v293
    %317 = vmatprep.subr.mxu0 0.0
    %318 = vmatpush1.msra.mxu0 0.0
    %319 = vmatprep.subr.mxu0 0.0
    %320 = vmatpush1.msra.mxu0 0.0
    %321 = vmatprep.subr.mxu0 0.0
    %322 = vmatpush1.msra.mxu0 0.0
    %323 = vmatprep.subr.mxu0 0.0
    %324 = vmatpush1.msra.mxu0 0.0
    %325 = vmatprep.subr.mxu0 0.0
    %326 = vmatpush1.msra.mxu0 0.0
    %327 = vmatprep.subr.mxu0 0.0
    %328 = vmatpush1.msra.mxu0 0.0
    %329 = vmatprep.subr.mxu0 0.0
    %330 = vmatpush1.msra.mxu0 0.0
    %331 = vmatprep.subr.mxu0 0.0
    %332 = vmatpush1.msra.mxu0 0.0
    %333 = vmatprep.subr.mxu0 0.0
    %334 = vmatpush1.msra.mxu0 0.0
    %335 = vmatprep.subr.mxu0 0.0
    %336 = vmatpush1.msra.mxu0 0.0
    %337 = vmatprep.subr.mxu0 0.0
    %338 = vmatpush1.msra.mxu0 0.0
    %339 = vmatprep.subr.mxu0 0.0
    %340 = vmatpush1.msra.mxu0 0.0
    %341 = vmatprep.subr.mxu0 0.0
    %342 = vmatpush1.msra.mxu0 0.0
    %343 = vmatprep.subr.mxu0 0.0
    %344 = vmatpush1.msra.mxu0 0.0
    %345 = vmatprep.subr.mxu0 0.0
    %346 = vmatpush1.msra.mxu0 0.0
    %347 = vmatprep.subr.mxu0 0.0
    %348 = vmatpush1.msra.mxu0 0.0
    %349 = vmatprep.subr.mxu0 0.0
    %350 = vmatpush1.msra.mxu0 0.0
    %351 = vmatprep.subr.mxu0 0.0
    %352 = vmatpush1.msra.mxu0 0.0
    %353 = vmatprep.subr.mxu0 0.0
    %354 = vmatpush1.msra.mxu0 0.0
    %355 = vmatprep.subr.mxu0 0.0
    %356 = vmatpush1.msra.mxu0 0.0
    %357 = vmatprep.subr.mxu0 0.0
    %358 = vmatpush1.msra.mxu0 0.0
    %359 = vmatprep.subr.mxu0 0.0
    %360 = vmatpush1.msra.mxu0 0.0
    %361 = vmatprep.subr.mxu0 0.0
    %362 = vmatpush1.msra.mxu0 0.0
    %363 = vmatprep.subr.mxu0 0.0
    %364 = vmatpush1.msra.mxu0 0.0
    %365 = vmatprep.mubr.f32.mxu0 0.0
    %366 = vmatmul.mubr.f32.gmra.mrb[0].mxu0 %v299
    %v367 = vpop.f32.mrb[0].mxu0
    %v368 = vadd.f32 %v297, %v367
    %v369 = vpop.f32.mrb[0].mxu0
    %370 = vdwg.mxu0
    %v371 = vmax.f32 %v368, 0.0
    %v372 = vld [vmem:[%s5] sm:$0xff]
    %v373 = vld [vmem:[%s5 + $0x8] sm:$0xff]
    %v374 = vld [vmem:[%s5 + $0x10] sm:$0xff]
    %v375 = vld [vmem:[%s5 + $0x18] sm:$0xff]
    %v376 = vlaneseq
    %v377 = vshrl.u32 %v376, 7
    %v378 = vsub.s32 0, %v377
    %v379 = vrot.slane %v260, %v378
    %v381 = vsel %vm169, %v371, 0
    %383 = vmatprep.subr.mxu0 0.0
    %384 = vmatpush1.msra.mxu0 %v372
    %385 = vmatprep.subr.mxu0 0.0
    %386 = vmatpush1.msra.mxu0 %v373
    %387 = vmatprep.subr.mxu0 0.0
    %388 = vmatpush1.msra.mxu0 %v374
    %389 = vmatprep.subr.mxu0 0.0
    %390 = vmatpush1.msra.mxu0 %v375
    %391 = vmatprep.subr.mxu0 0.0
    %392 = vmatpush1.msra.mxu0 0.0
    %393 = vmatprep.subr.mxu0 0.0
    %394 = vmatpush1.msra.mxu0 0.0
    %395 = vmatprep.subr.mxu0 0.0
    %396 = vmatpush1.msra.mxu0 0.0
    %397 = vmatprep.subr.mxu0 0.0
    %398 = vmatpush1.msra.mxu0 0.0
    %399 = vmatprep.subr.mxu0 0.0
    %400 = vmatpush1.msra.mxu0 0.0
    %401 = vmatprep.subr.mxu0 0.0
    %402 = vmatpush1.msra.mxu0 0.0
    %403 = vmatprep.subr.mxu0 0.0
    %404 = vmatpush1.msra.mxu0 0.0
    %405 = vmatprep.subr.mxu0 0.0
    %406 = vmatpush1.msra.mxu0 0.0
    %407 = vmatprep.subr.mxu0 0.0
    %408 = vmatpush1.msra.mxu0 0.0
    %409 = vmatprep.subr.mxu0 0.0
    %410 = vmatpush1.msra.mxu0 0.0
    %411 = vmatprep.subr.mxu0 0.0
    %412 = vmatpush1.msra.mxu0 0.0
    %413 = vmatprep.subr.mxu0 0.0
    %414 = vmatpush1.msra.mxu0 0.0
    %415 = vmatprep.subr.mxu0 0.0
    %416 = vmatpush1.msra.mxu0 0.0
    %417 = vmatprep.subr.mxu0 0.0
    %418 = vmatpush1.msra.mxu0 0.0
    %419 = vmatprep.subr.mxu0 0.0
    %420 = vmatpush1.msra.mxu0 0.0
    %421 = vmatprep.subr.mxu0 0.0
    %422 = vmatpush1.msra.mxu0 0.0
    %423 = vmatprep.subr.mxu0 0.0
    %424 = vmatpush1.msra.mxu0 0.0
    %425 = vmatprep.subr.mxu0 0.0
    %426 = vmatpush1.msra.mxu0 0.0
    %427 = vmatprep.subr.mxu0 0.0
    %428 = vmatpush1.msra.mxu0 0.0
    %429 = vmatprep.subr.mxu0 0.0
    %430 = vmatpush1.msra.mxu0 0.0
    %431 = vmatprep.subr.mxu0 0.0
    %432 = vmatpush1.msra.mxu0 0.0
    %433 = vmatprep.subr.mxu0 0.0
    %434 = vmatpush1.msra.mxu0 0.0
    %435 = vmatprep.subr.mxu0 0.0
    %436 = vmatpush1.msra.mxu0 0.0
    %437 = vmatprep.subr.mxu0 0.0
    %438 = vmatpush1.msra.mxu0 0.0
    %439 = vmatprep.subr.mxu0 0.0
    %440 = vmatpush1.msra.mxu0 0.0
    %441 = vmatprep.subr.mxu0 0.0
    %442 = vmatpush1.msra.mxu0 0.0
    %443 = vmatprep.subr.mxu0 0.0
    %444 = vmatpush1.msra.mxu0 0.0
    %445 = vmatprep.subr.mxu0 0.0
    %446 = vmatpush1.msra.mxu0 0.0
    %447 = vmatprep.mubr.f32.mxu0 0.0
    %448 = vmatmul.mubr.f32.gmra.mrb[0].mxu0 %v381
    %v449 = vpop.f32.mrb[0].mxu0
    %v450 = vadd.f32 %v379, %v449
    %v451 = vpop.f32.mrb[0].mxu0
    %452 = vdwg.mxu0
    %v453 = vmax.f32 %v450, 0.0
    %v454 = vlaneseq
    %v455 = vshrl.u32 %v454, 7
    %v456 = vsub.s32 0, %v455
    %v457 = vrot.slane %v261, %v456
    %v458 = vmul.f32 %v453, %v457
    %v459 = vsel %vm249, %v458, 0.0
    %460 = vadd.xlane.f32.xlu0 %v459
    %v461 = vpop.xlane.xlu0 %460
    %v462 = vstv %s256
    %v463 = vadd.f32 %v461, %v462
    %v464 = vmax.f32 %v463, 0.0
    %s465 = sld [smem:[#allocation2 + $0x2]]
    %v466 = vstv %s465
    %v467 = vmul.f32 %v466, %v255
    %s468 = ssub.f32 1.0, %s465
    %v469 = vstv %s468
    %v470 = vmul.f32 %v469, %v464
    %v471 = vadd.f32 %v467, %v470
    %472 = vst [vmem:[#allocation5] sm:$0xff] %v471
    // Predicated region
    $region38: #{tpu_custom_call.1} parent=1 // pred_check
      _
    $region39: #{tpu_custom_call.1} parent=1 // pred_check_branch
      %474 = sbr.rel (0) target = $region41
    $region40: #{tpu_custom_call.1} parent=1 // pred_region
      %s476 = ssub.s32 128, 128
      %477 = vsyncadd [#allocation3], %s476
      %s479 = sshll.u32 [#allocation5], 4
      %s480 = int_to_ptr.vmem [resolvable:$true] %s479
      %482 = dma.vmem_to_hbm [thread:$0]  %s480, 128, %s8, [#allocation3]
    $region41: #{tpu_custom_call.1} parent=1 // pred_fallthru
      _
    // Predicated region
    $region42: #{tpu_custom_call.1} parent=1 // pred_check
      _
    $region43: #{tpu_custom_call.1} parent=1 // pred_check_branch
      %484 = sbr.rel (0) target = $region45
    $region44: #{tpu_custom_call.1} parent=1 // pred_region
      %485 = dma.done [#allocation3], 128
    $region45: #{tpu_custom_call.1} parent=1 // pred_fallthru
      _
    %486 = vsyncpa [#allocation3], 1
    %487 = vsyncpa [#allocation4], 1

// kernel: tpu_custom_call.1
$region0: #{tpu_custom_call.1}
  #allocation0 [shape = 'u32[]', space=smem, size = 0x4, offset = 0x4, fixed_abs, tag = 'smem constant byte address 0x4 - core index']
  #allocation1 [shape = 'u32[144,128]{1,0:T(1,128)}', space=vmem, size = 0x12000, scoped, tag = 'internal scratch']
  %s0 = inlined_call_operand.vmem [shape: f32[8,64], index: 0, kind: input, shape index: {}]
  %s1 = inlined_call_operand.vmem [shape: f32[8,64], index: 1, kind: input, shape index: {}]
  %s2 = inlined_call_operand.vmem [shape: f32[64,32], index: 2, kind: input, shape index: {}]
  %s3 = inlined_call_operand.vmem [shape: f32[64,32], index: 3, kind: input, shape index: {}]
  %s4 = inlined_call_operand.vmem [shape: f32[32,16], index: 4, kind: input, shape index: {}]
  %s5 = inlined_call_operand.vmem [shape: f32[32,16], index: 5, kind: input, shape index: {}]
  %s6 = inlined_call_operand.vmem [shape: f32[10,128], index: 6, kind: input, shape index: {}]
  %s7 = inlined_call_operand.vmem [shape: f32[3], index: 7, kind: input, shape index: {}]
  %s8 = inlined_call_operand.hbm [shape: f32[8,128], index: 8, kind: output, shape index: {}]
  %s9 = sld [smem:[#allocation0]]
  $region46: #{tpu_custom_call.1} parent=0
    _
  %s11 = ssub.s32 1, %s9
  %s12 = scalar_select 0, %s11, %s9
  $region1: #{tpu_custom_call.1} parent=0
    #allocation2 [shape = 'u8[512]{0}', space=smem, size = 0x200, scoped, tag = 'input window, operand 7, single buffered']
    #allocation3 [shape = 's32[1]{0}', space=sflag, size = 0x4, scoped, tag = 'scoped memory for tpu_custom_call.1']
    #allocation4 [shape = 's32[1]{0}', space=sflag, size = 0x4, scoped, tag = 'scoped memory for tpu_custom_call.1']
    #allocation5 [shape = 'u8[4096]{0}', space=vmem, size = 0x1000, scoped, tag = 'output window, operand 0, single buffered']
    %13 = vsyncpa [#allocation4], 0
    %14 = vsyncpa [#allocation3], 0
    // Predicated region
    $region2: #{tpu_custom_call.1} parent=1 // pred_check
      _
    $region3: #{tpu_custom_call.1} parent=1 // pred_check_branch
      %16 = sbr.rel (0) target = $region5
    $region4: #{tpu_custom_call.1} parent=1 // pred_region
      _
    $region5: #{tpu_custom_call.1} parent=1 // pred_fallthru
      _
    // Predicated region
    $region6: #{tpu_custom_call.1} parent=1 // pred_check
      _
    $region7: #{tpu_custom_call.1} parent=1 // pred_check_branch
      %18 = sbr.rel (0) target = $region9
    $region8: #{tpu_custom_call.1} parent=1 // pred_region
      _
    $region9: #{tpu_custom_call.1} parent=1 // pred_fallthru
      _
    // Predicated region
    $region10: #{tpu_custom_call.1} parent=1 // pred_check
      _
    $region11: #{tpu_custom_call.1} parent=1 // pred_check_branch
      %20 = sbr.rel (0) target = $region13
    $region12: #{tpu_custom_call.1} parent=1 // pred_region
      _
    $region13: #{tpu_custom_call.1} parent=1 // pred_fallthru
      _
    // Predicated region
    $region14: #{tpu_custom_call.1} parent=1 // pred_check
      _
    $region15: #{tpu_custom_call.1} parent=1 // pred_check_branch
      %22 = sbr.rel (0) target = $region17
    $region16: #{tpu_custom_call.1} parent=1 // pred_region
      _
    $region17: #{tpu_custom_call.1} parent=1 // pred_fallthru
      _
    // Predicated region
    $region18: #{tpu_custom_call.1} parent=1 // pred_check
      _
    $region19: #{tpu_custom_call.1} parent=1 // pred_check_branch
      %24 = sbr.rel (0) target = $region21
    $region20: #{tpu_custom_call.1} parent=1 // pred_region
      _
    $region21: #{tpu_custom_call.1} parent=1 // pred_fallthru
      _
    // Predicated region
    $region22: #{tpu_custom_call.1} parent=1 // pred_check
      _
    $region23: #{tpu_custom_call.1} parent=1 // pred_check_branch
      %26 = sbr.rel (0) target = $region25
    $region24: #{tpu_custom_call.1} parent=1 // pred_region
      _
    $region25: #{tpu_custom_call.1} parent=1 // pred_fallthru
      _
    // Predicated region
    $region26: #{tpu_custom_call.1} parent=1 // pred_check
      _
    $region27: #{tpu_custom_call.1} parent=1 // pred_check_branch
      %28 = sbr.rel (0) target = $region29
    $region28: #{tpu_custom_call.1} parent=1 // pred_region
      _
    $region29: #{tpu_custom_call.1} parent=1 // pred_fallthru
      _
    // Predicated region
    $region30: #{tpu_custom_call.1} parent=1 // pred_check
      _
    $region31: #{tpu_custom_call.1} parent=1 // pred_check_branch
      %30 = sbr.rel (0) target = $region33
    $region32: #{tpu_custom_call.1} parent=1 // pred_region
      %s32 = ssub.s32 16, 16
      %33 = vsyncadd [#allocation4], %s32
      %s35 = sshll.u32 %s7, 4
      %s36 = int_to_ptr.vmem [resolvable:$true] %s35
      %38 = dma.vmem_to_smem %s36, 16, [#allocation2], [#allocation4]
    $region33: #{tpu_custom_call.1} parent=1 // pred_fallthru
      _
    // Predicated region
    $region34: #{tpu_custom_call.1} parent=1 // pred_check
      _
    $region35: #{tpu_custom_call.1} parent=1 // pred_check_branch
      %40 = sbr.rel (0) target = $region37
    $region36: #{tpu_custom_call.1} parent=1 // pred_region
      %41 = dma.done [#allocation4], 16
    $region37: #{tpu_custom_call.1} parent=1 // pred_fallthru
      _
    %42 = sfence
    %s43 = sld [smem:[#allocation2]]
    %v44 = vld [vmem:[%s6] sm:$0x1]
    %v45 = vld [vmem:[%s6 + $0x1] sm:$0x1]
    %v46 = vld [vmem:[%s6 + $0x2] sm:$0x1]
    %v47 = vld [vmem:[%s6 + $0x3] sm:$0x1]
    %v48 = vld [vmem:[%s6 + $0x4] sm:$0x1]
    %v49 = vld [vmem:[%s0] sm:$0xff]
    %vm50 = vcmask 523264
    %v51 = vsel %vm50, %v49, 0.0
    %52 = vadd.xlane.f32.xlu0 %v51
    %v53 = vpop.xlane.xlu0 %52
    %v54 = vrcp.pop 64.0
    %v55 = vmul.f32 %v53, %v54
    %v56 = vsub.f32 %v49, %v55
    %v57 = vmul.f32 %v56, %v56
    %v58 = vsel %vm50, %v57, 0.0
    %59 = vadd.xlane.f32.xlu0 %v58
    %v60 = vpop.xlane.xlu0 %59
    %v61 = vmul.f32 %v60, %v54
    %v62 = vadd.f32 %v61, 1e-05
    %v63 = vrsqrt.pop %v62
    %v64 = vmul.f32 %v56, %v63
    %v65 = vlaneseq
    %v66 = vshrl.u32 %v65, 7
    %v67 = vsub.s32 0, %v66
    %v68 = vrot.slane %v44, %v67
    %v69 = vmul.f32 %v64, %v68
    %v70 = vlaneseq
    %v71 = vshrl.u32 %v70, 7
    %v72 = vsub.s32 0, %v71
    %v73 = vrot.slane %v45, %v72
    %v74 = vadd.f32 %v69, %v73
    %v75 = vld [vmem:[%s2] sm:$0xff]
    %v76 = vld [vmem:[%s2 + $0x8] sm:$0xff]
    %v77 = vld [vmem:[%s2 + $0x10] sm:$0xff]
    %v78 = vld [vmem:[%s2 + $0x18] sm:$0xff]
    %v79 = vld [vmem:[%s2 + $0x20] sm:$0xff]
    %v80 = vld [vmem:[%s2 + $0x28] sm:$0xff]
    %v81 = vld [vmem:[%s2 + $0x30] sm:$0xff]
    %v82 = vld [vmem:[%s2 + $0x38] sm:$0xff]
    %v83 = vlaneseq
    %v84 = vshrl.u32 %v83, 7
    %v85 = vsub.s32 0, %v84
    %v86 = vrot.slane %v46, %v85
    %v88 = vsel %vm50, %v74, 0
    %90 = vmatprep.subr.mxu0 0.0
    %91 = vmatpush1.msra.mxu0 %v75
    %92 = vmatprep.subr.mxu0 0.0
    %93 = vmatpush1.msra.mxu0 %v76
    %94 = vmatprep.subr.mxu0 0.0
    %95 = vmatpush1.msra.mxu0 %v77
    %96 = vmatprep.subr.mxu0 0.0
    %97 = vmatpush1.msra.mxu0 %v78
    %98 = vmatprep.subr.mxu0 0.0
    %99 = vmatpush1.msra.mxu0 %v79
    %100 = vmatprep.subr.mxu0 0.0
    %101 = vmatpush1.msra.mxu0 %v80
    %102 = vmatprep.subr.mxu0 0.0
    %103 = vmatpush1.msra.mxu0 %v81
    %104 = vmatprep.subr.mxu0 0.0
    %105 = vmatpush1.msra.mxu0 %v82
    %106 = vmatprep.subr.mxu0 0.0
    %107 = vmatpush1.msra.mxu0 0.0
    %108 = vmatprep.subr.mxu0 0.0
    %109 = vmatpush1.msra.mxu0 0.0
    %110 = vmatprep.subr.mxu0 0.0
    %111 = vmatpush1.msra.mxu0 0.0
    %112 = vmatprep.subr.mxu0 0.0
    %113 = vmatpush1.msra.mxu0 0.0
    %114 = vmatprep.subr.mxu0 0.0
    %115 = vmatpush1.msra.mxu0 0.0
    %116 = vmatprep.subr.mxu0 0.0
    %117 = vmatpush1.msra.mxu0 0.0
    %118 = vmatprep.subr.mxu0 0.0
    %119 = vmatpush1.msra.mxu0 0.0
    %120 = vmatprep.subr.mxu0 0.0
    %121 = vmatpush1.msra.mxu0 0.0
    %122 = vmatprep.subr.mxu0 0.0
    %123 = vmatpush1.msra.mxu0 0.0
    %124 = vmatprep.subr.mxu0 0.0
    %125 = vmatpush1.msra.mxu0 0.0
    %126 = vmatprep.subr.mxu0 0.0
    %127 = vmatpush1.msra.mxu0 0.0
    %128 = vmatprep.subr.mxu0 0.0
    %129 = vmatpush1.msra.mxu0 0.0
    %130 = vmatprep.subr.mxu0 0.0
    %131 = vmatpush1.msra.mxu0 0.0
    %132 = vmatprep.subr.mxu0 0.0
    %133 = vmatpush1.msra.mxu0 0.0
    %134 = vmatprep.subr.mxu0 0.0
    %135 = vmatpush1.msra.mxu0 0.0
    %136 = vmatprep.subr.mxu0 0.0
    %137 = vmatpush1.msra.mxu0 0.0
    %138 = vmatprep.subr.mxu0 0.0
    %139 = vmatpush1.msra.mxu0 0.0
    %140 = vmatprep.subr.mxu0 0.0
    %141 = vmatpush1.msra.mxu0 0.0
    %142 = vmatprep.subr.mxu0 0.0
    %143 = vmatpush1.msra.mxu0 0.0
    %144 = vmatprep.subr.mxu0 0.0
    %145 = vmatpush1.msra.mxu0 0.0
    %146 = vmatprep.subr.mxu0 0.0
    %147 = vmatpush1.msra.mxu0 0.0
    %148 = vmatprep.subr.mxu0 0.0
    %149 = vmatpush1.msra.mxu0 0.0
    %150 = vmatprep.subr.mxu0 0.0
    %151 = vmatpush1.msra.mxu0 0.0
    %152 = vmatprep.subr.mxu0 0.0
    %153 = vmatpush1.msra.mxu0 0.0
    %154 = vmatprep.mubr.f32.mxu0 0.0
    %155 = vmatmul.mubr.f32.gmra.mrb[0].mxu0 %v88
    %v156 = vpop.f32.mrb[0].mxu0
    %v157 = vadd.f32 %v86, %v156
    %v158 = vpop.f32.mrb[0].mxu0
    %159 = vdwg.mxu0
    %v160 = vmax.f32 %v157, 0.0
    %v161 = vld [vmem:[%s4] sm:$0xff]
    %v162 = vld [vmem:[%s4 + $0x8] sm:$0xff]
    %v163 = vld [vmem:[%s4 + $0x10] sm:$0xff]
    %v164 = vld [vmem:[%s4 + $0x18] sm:$0xff]
    %v165 = vlaneseq
    %v166 = vshrl.u32 %v165, 7
    %v167 = vsub.s32 0, %v166
    %v168 = vrot.slane %v47, %v167
    %vm169 = vcmask 261120
    %v171 = vsel %vm169, %v160, 0
    %173 = vmatprep.subr.mxu0 0.0
    %174 = vmatpush1.msra.mxu0 %v161
    %175 = vmatprep.subr.mxu0 0.0
    %176 = vmatpush1.msra.mxu0 %v162
    %177 = vmatprep.subr.mxu0 0.0
    %178 = vmatpush1.msra.mxu0 %v163
    %179 = vmatprep.subr.mxu0 0.0
    %180 = vmatpush1.msra.mxu0 %v164
    %181 = vmatprep.subr.mxu0 0.0
    %182 = vmatpush1.msra.mxu0 0.0
    %183 = vmatprep.subr.mxu0 0.0
    %184 = vmatpush1.msra.mxu0 0.0
    %185 = vmatprep.subr.mxu0 0.0
    %186 = vmatpush1.msra.mxu0 0.0
    %187 = vmatprep.subr.mxu0 0.0
    %188 = vmatpush1.msra.mxu0 0.0
    %189 = vmatprep.subr.mxu0 0.0
    %190 = vmatpush1.msra.mxu0 0.0
    %191 = vmatprep.subr.mxu0 0.0
    %192 = vmatpush1.msra.mxu0 0.0
    %193 = vmatprep.subr.mxu0 0.0
    %194 = vmatpush1.msra.mxu0 0.0
    %195 = vmatprep.subr.mxu0 0.0
    %196 = vmatpush1.msra.mxu0 0.0
    %197 = vmatprep.subr.mxu0 0.0
    %198 = vmatpush1.msra.mxu0 0.0
    %199 = vmatprep.subr.mxu0 0.0
    %200 = vmatpush1.msra.mxu0 0.0
    %201 = vmatprep.subr.mxu0 0.0
    %202 = vmatpush1.msra.mxu0 0.0
    %203 = vmatprep.subr.mxu0 0.0
    %204 = vmatpush1.msra.mxu0 0.0
    %205 = vmatprep.subr.mxu0 0.0
    %206 = vmatpush1.msra.mxu0 0.0
    %207 = vmatprep.subr.mxu0 0.0
    %208 = vmatpush1.msra.mxu0 0.0
    %209 = vmatprep.subr.mxu0 0.0
    %210 = vmatpush1.msra.mxu0 0.0
    %211 = vmatprep.subr.mxu0 0.0
    %212 = vmatpush1.msra.mxu0 0.0
    %213 = vmatprep.subr.mxu0 0.0
    %214 = vmatpush1.msra.mxu0 0.0
    %215 = vmatprep.subr.mxu0 0.0
    %216 = vmatpush1.msra.mxu0 0.0
    %217 = vmatprep.subr.mxu0 0.0
    %218 = vmatpush1.msra.mxu0 0.0
    %219 = vmatprep.subr.mxu0 0.0
    %220 = vmatpush1.msra.mxu0 0.0
    %221 = vmatprep.subr.mxu0 0.0
    %222 = vmatpush1.msra.mxu0 0.0
    %223 = vmatprep.subr.mxu0 0.0
    %224 = vmatpush1.msra.mxu0 0.0
    %225 = vmatprep.subr.mxu0 0.0
    %226 = vmatpush1.msra.mxu0 0.0
    %227 = vmatprep.subr.mxu0 0.0
    %228 = vmatpush1.msra.mxu0 0.0
    %229 = vmatprep.subr.mxu0 0.0
    %230 = vmatpush1.msra.mxu0 0.0
    %231 = vmatprep.subr.mxu0 0.0
    %232 = vmatpush1.msra.mxu0 0.0
    %233 = vmatprep.subr.mxu0 0.0
    %234 = vmatpush1.msra.mxu0 0.0
    %235 = vmatprep.subr.mxu0 0.0
    %236 = vmatpush1.msra.mxu0 0.0
    %237 = vmatprep.mubr.f32.mxu0 0.0
    %238 = vmatmul.mubr.f32.gmra.mrb[0].mxu0 %v171
    %v239 = vpop.f32.mrb[0].mxu0
    %v240 = vadd.f32 %v168, %v239
    %v241 = vpop.f32.mrb[0].mxu0
    %242 = vdwg.mxu0
    %v243 = vmax.f32 %v240, 0.0
    %v244 = vlaneseq
    %v245 = vshrl.u32 %v244, 7
    %v246 = vsub.s32 0, %v245
    %v247 = vrot.slane %v48, %v246
    %v248 = vmul.f32 %v243, %v247
    %vm249 = vcmask 130048
    %v250 = vsel %vm249, %v248, 0.0
    %251 = vadd.xlane.f32.xlu0 %v250
    %v252 = vpop.xlane.xlu0 %251
    %v253 = vstv %s43
    %v254 = vadd.f32 %v252, %v253
    %v255 = vmax.f32 %v254, 0.0
    %s256 = sld [smem:[#allocation2 + $0x1]]
    %v257 = vld [vmem:[%s6 + $0x5] sm:$0x1]
    %v258 = vld [vmem:[%s6 + $0x6] sm:$0x1]
    %v259 = vld [vmem:[%s6 + $0x7] sm:$0x1]
    %v260 = vld [vmem:[%s6 + $0x8] sm:$0x1]
    %v261 = vld [vmem:[%s6 + $0x9] sm:$0x1]
    %v262 = vld [vmem:[%s1] sm:$0xff]
    %v263 = vsel %vm50, %v262, 0.0
    %264 = vadd.xlane.f32.xlu0 %v263
    %v265 = vpop.xlane.xlu0 %264
    %v266 = vmul.f32 %v265, %v54
    %v267 = vsub.f32 %v262, %v266
    %v268 = vmul.f32 %v267, %v267
    %v269 = vsel %vm50, %v268, 0.0
    %270 = vadd.xlane.f32.xlu0 %v269
    %v271 = vpop.xlane.xlu0 %270
    %v272 = vmul.f32 %v271, %v54
    %v273 = vadd.f32 %v272, 1e-05
    %v274 = vrsqrt.pop %v273
    %v275 = vmul.f32 %v267, %v274
    %v276 = vlaneseq
    %v277 = vshrl.u32 %v276, 7
    %v278 = vsub.s32 0, %v277
    %v279 = vrot.slane %v257, %v278
    %v280 = vmul.f32 %v275, %v279
    %v281 = vlaneseq
    %v282 = vshrl.u32 %v281, 7
    %v283 = vsub.s32 0, %v282
    %v284 = vrot.slane %v258, %v283
    %v285 = vadd.f32 %v280, %v284
    %v286 = vld [vmem:[%s3] sm:$0xff]
    %v287 = vld [vmem:[%s3 + $0x8] sm:$0xff]
    %v288 = vld [vmem:[%s3 + $0x10] sm:$0xff]
    %v289 = vld [vmem:[%s3 + $0x18] sm:$0xff]
    %v290 = vld [vmem:[%s3 + $0x20] sm:$0xff]
    %v291 = vld [vmem:[%s3 + $0x28] sm:$0xff]
    %v292 = vld [vmem:[%s3 + $0x30] sm:$0xff]
    %v293 = vld [vmem:[%s3 + $0x38] sm:$0xff]
    %v294 = vlaneseq
    %v295 = vshrl.u32 %v294, 7
    %v296 = vsub.s32 0, %v295
    %v297 = vrot.slane %v259, %v296
    %v299 = vsel %vm50, %v285, 0
    %301 = vmatprep.subr.mxu0 0.0
    %302 = vmatpush1.msra.mxu0 %v286
    %303 = vmatprep.subr.mxu0 0.0
    %304 = vmatpush1.msra.mxu0 %v287
    %305 = vmatprep.subr.mxu0 0.0
    %306 = vmatpush1.msra.mxu0 %v288
    %307 = vmatprep.subr.mxu0 0.0
    %308 = vmatpush1.msra.mxu0 %v289
    %309 = vmatprep.subr.mxu0 0.0
    %310 = vmatpush1.msra.mxu0 %v290
    %311 = vmatprep.subr.mxu0 0.0
    %312 = vmatpush1.msra.mxu0 %v291
    %313 = vmatprep.subr.mxu0 0.0
    %314 = vmatpush1.msra.mxu0 %v292
    %315 = vmatprep.subr.mxu0 0.0
    %316 = vmatpush1.msra.mxu0 %v293
    %317 = vmatprep.subr.mxu0 0.0
    %318 = vmatpush1.msra.mxu0 0.0
    %319 = vmatprep.subr.mxu0 0.0
    %320 = vmatpush1.msra.mxu0 0.0
    %321 = vmatprep.subr.mxu0 0.0
    %322 = vmatpush1.msra.mxu0 0.0
    %323 = vmatprep.subr.mxu0 0.0
    %324 = vmatpush1.msra.mxu0 0.0
    %325 = vmatprep.subr.mxu0 0.0
    %326 = vmatpush1.msra.mxu0 0.0
    %327 = vmatprep.subr.mxu0 0.0
    %328 = vmatpush1.msra.mxu0 0.0
    %329 = vmatprep.subr.mxu0 0.0
    %330 = vmatpush1.msra.mxu0 0.0
    %331 = vmatprep.subr.mxu0 0.0
    %332 = vmatpush1.msra.mxu0 0.0
    %333 = vmatprep.subr.mxu0 0.0
    %334 = vmatpush1.msra.mxu0 0.0
    %335 = vmatprep.subr.mxu0 0.0
    %336 = vmatpush1.msra.mxu0 0.0
    %337 = vmatprep.subr.mxu0 0.0
    %338 = vmatpush1.msra.mxu0 0.0
    %339 = vmatprep.subr.mxu0 0.0
    %340 = vmatpush1.msra.mxu0 0.0
    %341 = vmatprep.subr.mxu0 0.0
    %342 = vmatpush1.msra.mxu0 0.0
    %343 = vmatprep.subr.mxu0 0.0
    %344 = vmatpush1.msra.mxu0 0.0
    %345 = vmatprep.subr.mxu0 0.0
    %346 = vmatpush1.msra.mxu0 0.0
    %347 = vmatprep.subr.mxu0 0.0
    %348 = vmatpush1.msra.mxu0 0.0
    %349 = vmatprep.subr.mxu0 0.0
    %350 = vmatpush1.msra.mxu0 0.0
    %351 = vmatprep.subr.mxu0 0.0
    %352 = vmatpush1.msra.mxu0 0.0
    %353 = vmatprep.subr.mxu0 0.0
    %354 = vmatpush1.msra.mxu0 0.0
    %355 = vmatprep.subr.mxu0 0.0
    %356 = vmatpush1.msra.mxu0 0.0
    %357 = vmatprep.subr.mxu0 0.0
    %358 = vmatpush1.msra.mxu0 0.0
    %359 = vmatprep.subr.mxu0 0.0
    %360 = vmatpush1.msra.mxu0 0.0
    %361 = vmatprep.subr.mxu0 0.0
    %362 = vmatpush1.msra.mxu0 0.0
    %363 = vmatprep.subr.mxu0 0.0
    %364 = vmatpush1.msra.mxu0 0.0
    %365 = vmatprep.mubr.f32.mxu0 0.0
    %366 = vmatmul.mubr.f32.gmra.mrb[0].mxu0 %v299
    %v367 = vpop.f32.mrb[0].mxu0
    %v368 = vadd.f32 %v297, %v367
    %v369 = vpop.f32.mrb[0].mxu0
    %370 = vdwg.mxu0
    %v371 = vmax.f32 %v368, 0.0
    %v372 = vld [vmem:[%s5] sm:$0xff]
    %v373 = vld [vmem:[%s5 + $0x8] sm:$0xff]
    %v374 = vld [vmem:[%s5 + $0x10] sm:$0xff]
    %v375 = vld [vmem:[%s5 + $0x18] sm:$0xff]
    %v376 = vlaneseq
    %v377 = vshrl.u32 %v376, 7
    %v378 = vsub.s32 0, %v377
    %v379 = vrot.slane %v260, %v378
    %v381 = vsel %vm169, %v371, 0
    %383 = vmatprep.subr.mxu0 0.0
    %384 = vmatpush1.msra.mxu0 %v372
    %385 = vmatprep.subr.mxu0 0.0
    %386 = vmatpush1.msra.mxu0 %v373
    %387 = vmatprep.subr.mxu0 0.0
    %388 = vmatpush1.msra.mxu0 %v374
    %389 = vmatprep.subr.mxu0 0.0
    %390 = vmatpush1.msra.mxu0 %v375
    %391 = vmatprep.subr.mxu0 0.0
    %392 = vmatpush1.msra.mxu0 0.0
    %393 = vmatprep.subr.mxu0 0.0
    %394 = vmatpush1.msra.mxu0 0.0
    %395 = vmatprep.subr.mxu0 0.0
    %396 = vmatpush1.msra.mxu0 0.0
    %397 = vmatprep.subr.mxu0 0.0
    %398 = vmatpush1.msra.mxu0 0.0
    %399 = vmatprep.subr.mxu0 0.0
    %400 = vmatpush1.msra.mxu0 0.0
    %401 = vmatprep.subr.mxu0 0.0
    %402 = vmatpush1.msra.mxu0 0.0
    %403 = vmatprep.subr.mxu0 0.0
    %404 = vmatpush1.msra.mxu0 0.0
    %405 = vmatprep.subr.mxu0 0.0
    %406 = vmatpush1.msra.mxu0 0.0
    %407 = vmatprep.subr.mxu0 0.0
    %408 = vmatpush1.msra.mxu0 0.0
    %409 = vmatprep.subr.mxu0 0.0
    %410 = vmatpush1.msra.mxu0 0.0
    %411 = vmatprep.subr.mxu0 0.0
    %412 = vmatpush1.msra.mxu0 0.0
    %413 = vmatprep.subr.mxu0 0.0
    %414 = vmatpush1.msra.mxu0 0.0
    %415 = vmatprep.subr.mxu0 0.0
    %416 = vmatpush1.msra.mxu0 0.0
    %417 = vmatprep.subr.mxu0 0.0
    %418 = vmatpush1.msra.mxu0 0.0
    %419 = vmatprep.subr.mxu0 0.0
    %420 = vmatpush1.msra.mxu0 0.0
    %421 = vmatprep.subr.mxu0 0.0
    %422 = vmatpush1.msra.mxu0 0.0
    %423 = vmatprep.subr.mxu0 0.0
    %424 = vmatpush1.msra.mxu0 0.0
    %425 = vmatprep.subr.mxu0 0.0
    %426 = vmatpush1.msra.mxu0 0.0
    %427 = vmatprep.subr.mxu0 0.0
    %428 = vmatpush1.msra.mxu0 0.0
    %429 = vmatprep.subr.mxu0 0.0
    %430 = vmatpush1.msra.mxu0 0.0
    %431 = vmatprep.subr.mxu0 0.0
    %432 = vmatpush1.msra.mxu0 0.0
    %433 = vmatprep.subr.mxu0 0.0
    %434 = vmatpush1.msra.mxu0 0.0
    %435 = vmatprep.subr.mxu0 0.0
    %436 = vmatpush1.msra.mxu0 0.0
    %437 = vmatprep.subr.mxu0 0.0
    %438 = vmatpush1.msra.mxu0 0.0
    %439 = vmatprep.subr.mxu0 0.0
    %440 = vmatpush1.msra.mxu0 0.0
    %441 = vmatprep.subr.mxu0 0.0
    %442 = vmatpush1.msra.mxu0 0.0
    %443 = vmatprep.subr.mxu0 0.0
    %444 = vmatpush1.msra.mxu0 0.0
    %445 = vmatprep.subr.mxu0 0.0
    %446 = vmatpush1.msra.mxu0 0.0
    %447 = vmatprep.mubr.f32.mxu0 0.0
    %448 = vmatmul.mubr.f32.gmra.mrb[0].mxu0 %v381
    %v449 = vpop.f32.mrb[0].mxu0
    %v450 = vadd.f32 %v379, %v449
    %v451 = vpop.f32.mrb[0].mxu0
    %452 = vdwg.mxu0
    %v453 = vmax.f32 %v450, 0.0
    %v454 = vlaneseq
    %v455 = vshrl.u32 %v454, 7
    %v456 = vsub.s32 0, %v455
    %v457 = vrot.slane %v261, %v456
    %v458 = vmul.f32 %v453, %v457
    %v459 = vsel %vm249, %v458, 0.0
    %460 = vadd.xlane.f32.xlu0 %v459
    %v461 = vpop.xlane.xlu0 %460
    %v462 = vstv %s256
    %v463 = vadd.f32 %v461, %v462
    %v464 = vmax.f32 %v463, 0.0
    %s465 = sld [smem:[#allocation2 + $0x2]]
    %v466 = vstv %s465
    %v467 = vmul.f32 %v466, %v255
    %s468 = ssub.f32 1.0, %s465
    %v469 = vstv %s468
    %v470 = vmul.f32 %v469, %v464
    %v471 = vadd.f32 %v467, %v470
    %472 = vst [vmem:[#allocation5] sm:$0xff] %v471
    // Predicated region
    $region38: #{tpu_custom_call.1} parent=1 // pred_check
      _
    $region39: #{tpu_custom_call.1} parent=1 // pred_check_branch
      %474 = sbr.rel (0) target = $region41
    $region40: #{tpu_custom_call.1} parent=1 // pred_region
      %s476 = ssub.s32 128, 128
      %477 = vsyncadd [#allocation3], %s476
      %s479 = sshll.u32 [#allocation5], 4
      %s480 = int_to_ptr.vmem [resolvable:$true] %s479
      %482 = dma.vmem_to_hbm [thread:$0]  %s480, 128, %s8, [#allocation3]
    $region41: #{tpu_custom_call.1} parent=1 // pred_fallthru
      _
    // Predicated region
    $region42: #{tpu_custom_call.1} parent=1 // pred_check
      _
    $region43: #{tpu_custom_call.1} parent=1 // pred_check_branch
      %484 = sbr.rel (0) target = $region45
    $region44: #{tpu_custom_call.1} parent=1 // pred_region
      %485 = dma.done [#allocation3], 128
    $region45: #{tpu_custom_call.1} parent=1 // pred_fallthru
      _
    %486 = vsyncpa [#allocation3], 1
    %487 = vsyncpa [#allocation4], 1

</llo_original>
